<compile_context>
chip_gen: v5e
topology: v5e:2x2
jax: 0.10.0
libtpu: 0.0.40
codegen_flags: <defaults>
</compile_context>

<pallas_src>
import functools
import math

import jax
import jax.numpy as jnp
from jax.experimental import pallas as pl
from jax.experimental.pallas import tpu as pltpu

# ----------------------------- hyper-parameters ------------------------------
IMAGE_RES = 16
PATCH = 4
WIDTH = 64
LAYERS = 2
HEADS = WIDTH // 64          # CLIP: vision_heads = vision_width // 64  -> 1
EMBED_DIM = 32
LN_EPS = 1e-5


# ------------------------------- kernel helpers -------------------------------
def _layernorm_f32(x, g, b, eps):
    """Row-wise LayerNorm in float32 (matches the fp16-safe LayerNorm subclass)."""
    mu = jnp.mean(x, axis=-1, keepdims=True)
    var = jnp.mean(jnp.square(x - mu), axis=-1, keepdims=True)
    return (x - mu) * jax.lax.rsqrt(var + eps) * g.astype(jnp.float32) + b.astype(jnp.float32)


# --------------------------------- kernels ------------------------------------
def _embed_ln_kernel(p_ref, w_ref, cls_ref, pos_ref, g_ref, b_ref, o_ref, *, eps):
    """Patch conv (as matmul) + class token + pos emb + ln_pre, one batch element.

    p_ref:   (S, C*P*P) f32 -- row 0 is a zero pad that becomes the class token
    w_ref:   (C*P*P, D) bf16 (pre-transposed conv weight)
    cls_ref: (1, D)  pos_ref: (S, D)  g/b: (1, D)
    o_ref:   (S, D) f32
    """
    emb = jnp.dot(p_ref[...].astype(jnp.bfloat16), w_ref[...],
                  preferred_element_type=jnp.float32)                 # (S, D)
    row = jax.lax.broadcasted_iota(jnp.int32, emb.shape, 0)
    cls = jnp.broadcast_to(cls_ref[...].astype(jnp.float32), emb.shape)
    x = jnp.where(row == 0, cls, emb) + pos_ref[...].astype(jnp.float32)
    o_ref[...] = _layernorm_f32(x, g_ref[...], b_ref[...], eps).astype(o_ref.dtype)


def _block_kernel(x_ref, ln1g_ref, ln1b_ref, wqkv_ref, bqkv_ref, wout_ref, bout_ref,
                  ln2g_ref, ln2b_ref, wfc_ref, bfc_ref, wproj_ref, bproj_ref,
                  o_ref, *, n_head, eps):
    """Entire ResidualAttentionBlock for one batch element, fully in VMEM."""
    S, D = x_ref.shape
    dh = D // n_head
    scale = 1.0 / math.sqrt(dh)

    x = x_ref[...].astype(jnp.float32)                                # (S, D)

    # ---- attention branch: LN1 -> QKV -> softmax attention -> out proj ----
    h = _layernorm_f32(x, ln1g_ref[...], ln1b_ref[...], eps)
    qkv = jnp.dot(h.astype(jnp.bfloat16), wqkv_ref[...],
                  preferred_element_type=jnp.float32) + bqkv_ref[...]  # (S, 3D)

    heads = []
    for hh in range(n_head):                                          # static unroll
        q = qkv[:, hh * dh:(hh + 1) * dh].astype(jnp.bfloat16)
        k = qkv[:, D + hh * dh:D + (hh + 1) * dh].astype(jnp.bfloat16)
        v = qkv[:, 2 * D + hh * dh:2 * D + (hh + 1) * dh].astype(jnp.bfloat16)
        s = jax.lax.dot_general(q, k, (((1,), (1,)), ((), ())),
                                preferred_element_type=jnp.float32) * scale
        s = s - jnp.max(s, axis=-1, keepdims=True)                    # f32 softmax
        p = jnp.exp(s)
        p = p / jnp.sum(p, axis=-1, keepdims=True)
        heads.append(jnp.dot(p.astype(jnp.bfloat16), v,
                             preferred_element_type=jnp.float32))
    attn = heads[0] if n_head == 1 else jnp.concatenate(heads, axis=-1)
    attn = jnp.dot(attn.astype(jnp.bfloat16), wout_ref[...],
                   preferred_element_type=jnp.float32) + bout_ref[...]
    x = x + attn

    # ---- MLP branch: LN2 -> c_fc -> QuickGELU -> c_proj -------------------
    # TODO(synk): reference QuickGELU.forward is missing its `return` (returns
    # None); we implement the intended x * sigmoid(1.702 * x).
    h2 = _layernorm_f32(x, ln2g_ref[...], ln2b_ref[...], eps)
    m = jnp.dot(h2.astype(jnp.bfloat16), wfc_ref[...],
                preferred_element_type=jnp.float32) + bfc_ref[...]
    m = m * jax.nn.sigmoid(1.702 * m)                                 # f32 QuickGELU
    mlp = jnp.dot(m.astype(jnp.bfloat16), wproj_ref[...],
                  preferred_element_type=jnp.float32) + bproj_ref[...]
    o_ref[...] = (x + mlp).astype(o_ref.dtype)


def _head_kernel(x_ref, g_ref, b_ref, w_ref, o_ref, *, eps):
    """ln_post on the class token + final projection (no bias)."""
    x = _layernorm_f32(x_ref[...].astype(jnp.float32), g_ref[...], b_ref[...], eps)
    o_ref[...] = jnp.dot(x.astype(jnp.bfloat16), w_ref[...],
                         preferred_element_type=jnp.float32).astype(o_ref.dtype)


# ------------------------------ pallas wrappers -------------------------------
def _full_spec(shape):
    n = len(shape)
    return pl.BlockSpec(shape, lambda b: (0,) * n)


def residual_block(x, p, *, n_head):
    B, S, D = x.shape
    kernel = functools.partial(_block_kernel, n_head=n_head, eps=LN_EPS)
    return pl.pallas_call(
        kernel,
        out_shape=jax.ShapeDtypeStruct((B, S, D), x.dtype),
        grid=(B,),
        in_specs=[
            pl.BlockSpec((None, S, D), lambda b: (b, 0, 0)),   # x  (batch-sliced)
            _full_spec((1, D)), _full_spec((1, D)),            # ln1 g/b
            _full_spec((D, 3 * D)), _full_spec((1, 3 * D)),    # qkv w/b
            _full_spec((D, D)), _full_spec((1, D)),            # out proj w/b
            _full_spec((1, D)), _full_spec((1, D)),            # ln2 g/b
            _full_spec((D, 4 * D)), _full_spec((1, 4 * D)),    # c_fc w/b
            _full_spec((4 * D, D)), _full_spec((1, D)),        # c_proj w/b
        ],
        out_specs=pl.BlockSpec((None, S, D), lambda b: (b, 0, 0)),
        compiler_params=pltpu.CompilerParams(dimension_semantics=("parallel",)),
    )(x, p["ln1_g"], p["ln1_b"], p["w_qkv"], p["b_qkv"], p["w_out"], p["b_out"],
      p["ln2_g"], p["ln2_b"], p["w_fc"], p["b_fc"], p["w_proj"], p["b_proj"])


def vit_forward(image, params):
    """ViT.forward — image: (B, 3, H, W) NCHW -> (B, EMBED_DIM)."""
    B, C, H, W = image.shape
    P = PATCH
    nP = H // P
    S = nP * nP + 1
    D = WIDTH
    cpp = C * P * P

    # Patch extraction: conv(stride == kernel, no bias) == matmul over flattened
    # patches.  Pure layout glue in JAX; a zero row is prepended per batch so
    # the kernel can materialize [class_token, patch_embeds] without an
    # in-kernel concatenate.
    patches = image.reshape(B, C, nP, P, nP, P).transpose(0, 2, 4, 1, 3, 5)
    patches = patches.reshape(B, nP * nP, cpp)
    patches = jnp.concatenate(
        [jnp.zeros((B, 1, cpp), patches.dtype), patches], axis=1)      # (B, S, cpp)

    x = pl.pallas_call(
        functools.partial(_embed_ln_kernel, eps=LN_EPS),
        out_shape=jax.ShapeDtypeStruct((B, S, D), jnp.float32),
        grid=(B,),
        in_specs=[
            pl.BlockSpec((None, S, cpp), lambda b: (b, 0, 0)),
            _full_spec((cpp, D)),
            _full_spec((1, D)),
            _full_spec((S, D)),
            _full_spec((1, D)),
            _full_spec((1, D)),
        ],
        out_specs=pl.BlockSpec((None, S, D), lambda b: (b, 0, 0)),
        compiler_params=pltpu.CompilerParams(dimension_semantics=("parallel",)),
    )(patches, params["conv_w_t"], params["class_emb"], params["pos_emb"],
      params["ln_pre_g"], params["ln_pre_b"])

    for blk in params["blocks"]:
        x = residual_block(x, blk, n_head=HEADS)

    cls_tok = x[:, 0, :]                                               # (B, D) glue
    out = pl.pallas_call(
        functools.partial(_head_kernel, eps=LN_EPS),
        out_shape=jax.ShapeDtypeStruct((B, EMBED_DIM), jnp.float32),
        grid=(1,),
        in_specs=[
            _full_spec((B, D)),
            _full_spec((1, D)),
            _full_spec((1, D)),
            _full_spec((D, EMBED_DIM)),
        ],
        out_specs=_full_spec((B, EMBED_DIM)),
        compiler_params=pltpu.CompilerParams(dimension_semantics=("arbitrary",)),
    )(cls_tok, params["ln_post_g"], params["ln_post_b"], params["proj"])
    return out


# ------------------------------ parameter setup -------------------------------
def init_params(key):
    keys = iter(jax.random.split(key, 64))
    P, C = PATCH, 3
    nP = IMAGE_RES // P
    S = nP * nP + 1
    D = WIDTH
    scale = D ** (-0.5)
    attn_std = D ** (-0.5)
    proj_std = D ** (-0.5) * (2 * LAYERS) ** (-0.5)
    fc_std = (2 * D) ** (-0.5)

    def block_params():
        return {
            "ln1_g": jnp.ones((1, D), jnp.float32),
            "ln1_b": jnp.zeros((1, D), jnp.float32),
            "ln2_g": jnp.ones((1, D), jnp.float32),
            "ln2_b": jnp.zeros((1, D), jnp.float32),
            # weights stored pre-transposed to (K, N) and pre-cast to bf16
            "w_qkv": (attn_std * jax.random.normal(next(keys), (3 * D, D), jnp.float32)
                      ).T.astype(jnp.bfloat16),
            "b_qkv": jnp.zeros((1, 3 * D), jnp.float32),
            "w_out": (proj_std * jax.random.normal(next(keys), (D, D), jnp.float32)
                      ).T.astype(jnp.bfloat16),
            "b_out": jnp.zeros((1, D), jnp.float32),
            "w_fc": (fc_std * jax.random.normal(next(keys), (4 * D, D), jnp.float32)
                     ).T.astype(jnp.bfloat16),
            "b_fc": jnp.zeros((1, 4 * D), jnp.float32),
            "w_proj": (proj_std * jax.random.normal(next(keys), (D, 4 * D), jnp.float32)
                       ).T.astype(jnp.bfloat16),
            "b_proj": jnp.zeros((1, D), jnp.float32),
        }

    conv_w = (C * P * P) ** (-0.5) * jax.random.normal(
        next(keys), (D, C, P, P), jnp.float32)
    return {
        # conv weight pre-flattened/transposed once: (C*P*P, width), bf16
        "conv_w_t": conv_w.reshape(D, C * P * P).T.astype(jnp.bfloat16),
        "class_emb": scale * jax.random.normal(next(keys), (1, D), jnp.float32),
        "pos_emb": scale * jax.random.normal(next(keys), (S, D), jnp.float32),
        "ln_pre_g": jnp.ones((1, D), jnp.float32),
        "ln_pre_b": jnp.zeros((1, D), jnp.float32),
        "ln_post_g": jnp.ones((1, D), jnp.float32),
        "ln_post_b": jnp.zeros((1, D), jnp.float32),
        "proj": (scale * jax.random.normal(next(keys), (D, EMBED_DIM), jnp.float32)
                 ).astype(jnp.bfloat16),
        "blocks": [block_params() for _ in range(LAYERS)],
    }


# ------------------------------------ main -------------------------------------
if __name__ == "__main__":
    root = jax.random.PRNGKey(0)
    pkey, ikey = jax.random.split(root)

    params = init_params(pkey)
    image = jax.random.normal(ikey, (2, 3, IMAGE_RES, IMAGE_RES), jnp.float32)  # NCHW

    out = jax.jit(vit_forward)(image, params)
    jax.block_until_ready(out)

    assert out.shape == (2, EMBED_DIM)
    print("KERNEL_OK")
</pallas_src>

<mosaic_0001>
module attributes {stable_mosaic.version = 11 : i64} {
  func.func @_embed_ln_kernel(%arg0: i32, %arg1: memref<1x17x48xf32, #tpu.memory_space<vmem>>, %arg2: memref<48x64xbf16, #tpu.memory_space<vmem>>, %arg3: memref<1x64xf32, #tpu.memory_space<vmem>>, %arg4: memref<17x64xf32, #tpu.memory_space<vmem>>, %arg5: memref<1x64xf32, #tpu.memory_space<vmem>>, %arg6: memref<1x64xf32, #tpu.memory_space<vmem>>, %arg7: memref<1x17x64xf32, #tpu.memory_space<vmem>>) attributes {dimension_semantics = [#tpu.dimension_semantics<parallel>], iteration_bounds = array<i64: 2>, scalar_prefetch = 0 : i64, scratch_operands = 0 : i64, tpu.core_type = #tpu.core_type<tc>, window_params = [{transform_indices = @transform_0, window_bounds = array<i64: 1, 17, 48>}, {pipeline_mode = #tpu.pipeline_mode<synchronous>, transform_indices = @transform_1, window_bounds = array<i64: 48, 64>}, {pipeline_mode = #tpu.pipeline_mode<synchronous>, transform_indices = @transform_2, window_bounds = array<i64: 1, 64>}, {pipeline_mode = #tpu.pipeline_mode<synchronous>, transform_indices = @transform_3, window_bounds = array<i64: 17, 64>}, {pipeline_mode = #tpu.pipeline_mode<synchronous>, transform_indices = @transform_4, window_bounds = array<i64: 1, 64>}, {pipeline_mode = #tpu.pipeline_mode<synchronous>, transform_indices = @transform_5, window_bounds = array<i64: 1, 64>}, {transform_indices = @transform_6, window_bounds = array<i64: 1, 17, 64>}]} {
    %c0 = arith.constant 0 : index
    %c0_0 = arith.constant 0 : index
    %c0_1 = arith.constant 0 : index
    %0 = vector.load %arg1[%c0, %c0_0, %c0_1] : memref<1x17x48xf32, #tpu.memory_space<vmem>>, vector<1x17x48xf32>
    %1 = vector.shape_cast %0 : vector<1x17x48xf32> to vector<17x48xf32>
    %2 = arith.truncf %1 : vector<17x48xf32> to vector<17x48xbf16>
    %c0_2 = arith.constant 0 : index
    %c0_3 = arith.constant 0 : index
    %3 = vector.load %arg2[%c0_2, %c0_3] : memref<48x64xbf16, #tpu.memory_space<vmem>>, vector<48x64xbf16>
    %cst = arith.constant dense<0.000000e+00> : vector<17x64xf32>
    %4 = tpu.matmul %2, %3, %cst {dimension_numbers = #tpu.dot_dimension_numbers<[1], [0], [0], [1], [0, 0, 1, 1], [], []>} : vector<17x48xbf16>, vector<48x64xbf16>, vector<17x64xf32> -> vector<17x64xf32>
    %5 = tpu.iota {dimensions = array<i32: 0>} : vector<17x64xi32>
    %c0_4 = arith.constant 0 : index
    %c0_5 = arith.constant 0 : index
    %6 = vector.load %arg3[%c0_4, %c0_5] : memref<1x64xf32, #tpu.memory_space<vmem>>, vector<1x64xf32>
    %7 = vector.shape_cast %6 : vector<1x64xf32> to vector<1x64xf32>
    %8 = vector.broadcast %7 : vector<1x64xf32> to vector<17x64xf32>
    %c0_i32 = arith.constant 0 : i32
    %9 = vector.broadcast %c0_i32 : i32 to vector<17x64xi32>
    %10 = arith.cmpi eq, %5, %9 : vector<17x64xi32>
    %11 = arith.select %10, %8, %4 : vector<17x64xi1>, vector<17x64xf32>
    %c0_6 = arith.constant 0 : index
    %c0_7 = arith.constant 0 : index
    %12 = vector.load %arg4[%c0_6, %c0_7] : memref<17x64xf32, #tpu.memory_space<vmem>>, vector<17x64xf32>
    %13 = arith.addf %11, %12 : vector<17x64xf32>
    %c0_8 = arith.constant 0 : index
    %c0_9 = arith.constant 0 : index
    %14 = vector.load %arg5[%c0_8, %c0_9] : memref<1x64xf32, #tpu.memory_space<vmem>>, vector<1x64xf32>
    %c0_10 = arith.constant 0 : index
    %c0_11 = arith.constant 0 : index
    %15 = vector.load %arg6[%c0_10, %c0_11] : memref<1x64xf32, #tpu.memory_space<vmem>>, vector<1x64xf32>
    %cst_12 = arith.constant dense<0.000000e+00> : vector<17xf32>
    %16 = vector.multi_reduction <add>, %13, %cst_12 [1] : vector<17x64xf32> to vector<17xf32>
    %17 = vector.shape_cast %16 : vector<17xf32> to vector<17x1xf32>
    %cst_13 = arith.constant 6.400000e+01 : f32
    %18 = vector.broadcast %cst_13 : f32 to vector<17x1xf32>
    %19 = arith.divf %17, %18 : vector<17x1xf32>
    %20 = vector.broadcast %19 : vector<17x1xf32> to vector<17x64xf32>
    %21 = arith.subf %13, %20 : vector<17x64xf32>
    %22 = arith.mulf %21, %21 : vector<17x64xf32>
    %cst_14 = arith.constant dense<0.000000e+00> : vector<17xf32>
    %23 = vector.multi_reduction <add>, %22, %cst_14 [1] : vector<17x64xf32> to vector<17xf32>
    %24 = vector.shape_cast %23 : vector<17xf32> to vector<17x1xf32>
    %cst_15 = arith.constant 6.400000e+01 : f32
    %25 = vector.broadcast %cst_15 : f32 to vector<17x1xf32>
    %26 = arith.divf %24, %25 : vector<17x1xf32>
    %27 = vector.broadcast %19 : vector<17x1xf32> to vector<17x64xf32>
    %28 = arith.subf %13, %27 : vector<17x64xf32>
    %cst_16 = arith.constant 9.99999974E-6 : f32
    %29 = vector.broadcast %cst_16 : f32 to vector<17x1xf32>
    %30 = arith.addf %26, %29 : vector<17x1xf32>
    %31 = math.rsqrt %30 : vector<17x1xf32>
    %32 = vector.broadcast %31 : vector<17x1xf32> to vector<17x64xf32>
    %33 = arith.mulf %28, %32 : vector<17x64xf32>
    %34 = vector.broadcast %14 : vector<1x64xf32> to vector<17x64xf32>
    %35 = arith.mulf %33, %34 : vector<17x64xf32>
    %36 = vector.broadcast %15 : vector<1x64xf32> to vector<17x64xf32>
    %37 = arith.addf %35, %36 : vector<17x64xf32>
    %c0_17 = arith.constant 0 : index
    %c0_18 = arith.constant 0 : index
    %c0_19 = arith.constant 0 : index
    %38 = vector.load %arg7[%c0_17, %c0_18, %c0_19] : memref<1x17x64xf32, #tpu.memory_space<vmem>>, vector<1x17x64xf32>
    %39 = vector.shape_cast %38 : vector<1x17x64xf32> to vector<17x64xf32>
    %40 = vector.shape_cast %37 : vector<17x64xf32> to vector<1x17x64xf32>
    tpu.vector_store %arg7[%c0_17, %c0_18, %c0_19], %40 {strides = array<i32>} : memref<1x17x64xf32, #tpu.memory_space<vmem>>, vector<1x17x64xf32>,
    return
  }
  func.func @transform_0(%arg0: i32) -> (i32, i32, i32) {
    %c0_i32 = arith.constant 0 : i32
    %c0_i32_0 = arith.constant 0 : i32
    %c0_i32_1 = arith.constant 0 : i32
    return %arg0, %c0_i32, %c0_i32_0 : i32, i32, i32
  }
  func.func @transform_1(%arg0: i32) -> (i32, i32) {
    %c0_i32 = arith.constant 0 : i32
    %c0_i32_0 = arith.constant 0 : i32
    %c0_i32_1 = arith.constant 0 : i32
    return %c0_i32, %c0_i32_0 : i32, i32
  }
  func.func @transform_2(%arg0: i32) -> (i32, i32) {
    %c0_i32 = arith.constant 0 : i32
    %c0_i32_0 = arith.constant 0 : i32
    %c0_i32_1 = arith.constant 0 : i32
    return %c0_i32, %c0_i32_0 : i32, i32
  }
  func.func @transform_3(%arg0: i32) -> (i32, i32) {
    %c0_i32 = arith.constant 0 : i32
    %c0_i32_0 = arith.constant 0 : i32
    %c0_i32_1 = arith.constant 0 : i32
    return %c0_i32, %c0_i32_0 : i32, i32
  }
  func.func @transform_4(%arg0: i32) -> (i32, i32) {
    %c0_i32 = arith.constant 0 : i32
    %c0_i32_0 = arith.constant 0 : i32
    %c0_i32_1 = arith.constant 0 : i32
    return %c0_i32, %c0_i32_0 : i32, i32
  }
  func.func @transform_5(%arg0: i32) -> (i32, i32) {
    %c0_i32 = arith.constant 0 : i32
    %c0_i32_0 = arith.constant 0 : i32
    %c0_i32_1 = arith.constant 0 : i32
    return %c0_i32, %c0_i32_0 : i32, i32
  }
  func.func @transform_6(%arg0: i32) -> (i32, i32, i32) {
    %c0_i32 = arith.constant 0 : i32
    %c0_i32_0 = arith.constant 0 : i32
    %c0_i32_1 = arith.constant 0 : i32
    return %arg0, %c0_i32, %c0_i32_0 : i32, i32, i32
  }
}

module attributes {stable_mosaic.version = 11 : i64} {
  func.func @_block_kernel(%arg0: i32, %arg1: memref<1x17x64xf32, #tpu.memory_space<vmem>>, %arg2: memref<1x64xf32, #tpu.memory_space<vmem>>, %arg3: memref<1x64xf32, #tpu.memory_space<vmem>>, %arg4: memref<64x192xbf16, #tpu.memory_space<vmem>>, %arg5: memref<1x192xf32, #tpu.memory_space<vmem>>, %arg6: memref<64x64xbf16, #tpu.memory_space<vmem>>, %arg7: memref<1x64xf32, #tpu.memory_space<vmem>>, %arg8: memref<1x64xf32, #tpu.memory_space<vmem>>, %arg9: memref<1x64xf32, #tpu.memory_space<vmem>>, %arg10: memref<64x256xbf16, #tpu.memory_space<vmem>>, %arg11: memref<1x256xf32, #tpu.memory_space<vmem>>, %arg12: memref<256x64xbf16, #tpu.memory_space<vmem>>, %arg13: memref<1x64xf32, #tpu.memory_space<vmem>>, %arg14: memref<1x17x64xf32, #tpu.memory_space<vmem>>) attributes {dimension_semantics = [#tpu.dimension_semantics<parallel>], iteration_bounds = array<i64: 2>, scalar_prefetch = 0 : i64, scratch_operands = 0 : i64, tpu.core_type = #tpu.core_type<tc>, window_params = [{transform_indices = @transform_0, window_bounds = array<i64: 1, 17, 64>}, {pipeline_mode = #tpu.pipeline_mode<synchronous>, transform_indices = @transform_1, window_bounds = array<i64: 1, 64>}, {pipeline_mode = #tpu.pipeline_mode<synchronous>, transform_indices = @transform_2, window_bounds = array<i64: 1, 64>}, {pipeline_mode = #tpu.pipeline_mode<synchronous>, transform_indices = @transform_3, window_bounds = array<i64: 64, 192>}, {pipeline_mode = #tpu.pipeline_mode<synchronous>, transform_indices = @transform_4, window_bounds = array<i64: 1, 192>}, {pipeline_mode = #tpu.pipeline_mode<synchronous>, transform_indices = @transform_5, window_bounds = array<i64: 64, 64>}, {pipeline_mode = #tpu.pipeline_mode<synchronous>, transform_indices = @transform_6, window_bounds = array<i64: 1, 64>}, {pipeline_mode = #tpu.pipeline_mode<synchronous>, transform_indices = @transform_7, window_bounds = array<i64: 1, 64>}, {pipeline_mode = #tpu.pipeline_mode<synchronous>, transform_indices = @transform_8, window_bounds = array<i64: 1, 64>}, {pipeline_mode = #tpu.pipeline_mode<synchronous>, transform_indices = @transform_9, window_bounds = array<i64: 64, 256>}, {pipeline_mode = #tpu.pipeline_mode<synchronous>, transform_indices = @transform_10, window_bounds = array<i64: 1, 256>}, {pipeline_mode = #tpu.pipeline_mode<synchronous>, transform_indices = @transform_11, window_bounds = array<i64: 256, 64>}, {pipeline_mode = #tpu.pipeline_mode<synchronous>, transform_indices = @transform_12, window_bounds = array<i64: 1, 64>}, {transform_indices = @transform_13, window_bounds = array<i64: 1, 17, 64>}]} {
    %c0 = arith.constant 0 : index
    %c0_0 = arith.constant 0 : index
    %c0_1 = arith.constant 0 : index
    %0 = vector.load %arg1[%c0, %c0_0, %c0_1] : memref<1x17x64xf32, #tpu.memory_space<vmem>>, vector<1x17x64xf32>
    %1 = vector.shape_cast %0 : vector<1x17x64xf32> to vector<17x64xf32>
    %c0_2 = arith.constant 0 : index
    %c0_3 = arith.constant 0 : index
    %2 = vector.load %arg2[%c0_2, %c0_3] : memref<1x64xf32, #tpu.memory_space<vmem>>, vector<1x64xf32>
    %c0_4 = arith.constant 0 : index
    %c0_5 = arith.constant 0 : index
    %3 = vector.load %arg3[%c0_4, %c0_5] : memref<1x64xf32, #tpu.memory_space<vmem>>, vector<1x64xf32>
    %cst = arith.constant dense<0.000000e+00> : vector<17xf32>
    %4 = vector.multi_reduction <add>, %1, %cst [1] : vector<17x64xf32> to vector<17xf32>
    %5 = vector.shape_cast %4 : vector<17xf32> to vector<17x1xf32>
    %cst_6 = arith.constant 6.400000e+01 : f32
    %6 = vector.broadcast %cst_6 : f32 to vector<17x1xf32>
    %7 = arith.divf %5, %6 : vector<17x1xf32>
    %8 = vector.broadcast %7 : vector<17x1xf32> to vector<17x64xf32>
    %9 = arith.subf %1, %8 : vector<17x64xf32>
    %10 = arith.mulf %9, %9 : vector<17x64xf32>
    %cst_7 = arith.constant dense<0.000000e+00> : vector<17xf32>
    %11 = vector.multi_reduction <add>, %10, %cst_7 [1] : vector<17x64xf32> to vector<17xf32>
    %12 = vector.shape_cast %11 : vector<17xf32> to vector<17x1xf32>
    %cst_8 = arith.constant 6.400000e+01 : f32
    %13 = vector.broadcast %cst_8 : f32 to vector<17x1xf32>
    %14 = arith.divf %12, %13 : vector<17x1xf32>
    %15 = vector.broadcast %7 : vector<17x1xf32> to vector<17x64xf32>
    %16 = arith.subf %1, %15 : vector<17x64xf32>
    %cst_9 = arith.constant 9.99999974E-6 : f32
    %17 = vector.broadcast %cst_9 : f32 to vector<17x1xf32>
    %18 = arith.addf %14, %17 : vector<17x1xf32>
    %19 = math.rsqrt %18 : vector<17x1xf32>
    %20 = vector.broadcast %19 : vector<17x1xf32> to vector<17x64xf32>
    %21 = arith.mulf %16, %20 : vector<17x64xf32>
    %22 = vector.broadcast %2 : vector<1x64xf32> to vector<17x64xf32>
    %23 = arith.mulf %21, %22 : vector<17x64xf32>
    %24 = vector.broadcast %3 : vector<1x64xf32> to vector<17x64xf32>
    %25 = arith.addf %23, %24 : vector<17x64xf32>
    %26 = arith.truncf %25 : vector<17x64xf32> to vector<17x64xbf16>
    %c0_10 = arith.constant 0 : index
    %c0_11 = arith.constant 0 : index
    %27 = vector.load %arg4[%c0_10, %c0_11] : memref<64x192xbf16, #tpu.memory_space<vmem>>, vector<64x192xbf16>
    %cst_12 = arith.constant dense<0.000000e+00> : vector<17x192xf32>
    %28 = tpu.matmul %26, %27, %cst_12 {dimension_numbers = #tpu.dot_dimension_numbers<[1], [0], [0], [1], [0, 0, 1, 1], [], []>} : vector<17x64xbf16>, vector<64x192xbf16>, vector<17x192xf32> -> vector<17x192xf32>
    %c0_13 = arith.constant 0 : index
    %c0_14 = arith.constant 0 : index
    %29 = vector.load %arg5[%c0_13, %c0_14] : memref<1x192xf32, #tpu.memory_space<vmem>>, vector<1x192xf32>
    %30 = vector.broadcast %29 : vector<1x192xf32> to vector<17x192xf32>
    %31 = arith.addf %28, %30 : vector<17x192xf32>
    %32 = vector.extract_strided_slice %31 {offsets = [0, 0], sizes = [17, 64], strides = [1, 1]} : vector<17x192xf32> to vector<17x64xf32>
    %33 = arith.truncf %32 : vector<17x64xf32> to vector<17x64xbf16>
    %34 = vector.extract_strided_slice %31 {offsets = [0, 64], sizes = [17, 64], strides = [1, 1]} : vector<17x192xf32> to vector<17x64xf32>
    %35 = arith.truncf %34 : vector<17x64xf32> to vector<17x64xbf16>
    %36 = vector.extract_strided_slice %31 {offsets = [0, 128], sizes = [17, 64], strides = [1, 1]} : vector<17x192xf32> to vector<17x64xf32>
    %37 = arith.truncf %36 : vector<17x64xf32> to vector<17x64xbf16>
    %cst_15 = arith.constant dense<0.000000e+00> : vector<17x17xf32>
    %38 = tpu.matmul %33, %35, %cst_15 {dimension_numbers = #tpu.dot_dimension_numbers<[1], [1], [0], [0], [0, 0, 1, 0], [], []>} : vector<17x64xbf16>, vector<17x64xbf16>, vector<17x17xf32> -> vector<17x17xf32>
    %cst_16 = arith.constant 1.250000e-01 : f32
    %39 = vector.broadcast %cst_16 : f32 to vector<17x17xf32>
    %40 = arith.mulf %38, %39 : vector<17x17xf32>
    %cst_17 = arith.constant dense<0xFF800000> : vector<17xf32>
    %41 = vector.multi_reduction <maximumf>, %40, %cst_17 [1] : vector<17x17xf32> to vector<17xf32>
    %42 = vector.shape_cast %41 : vector<17xf32> to vector<17x1xf32>
    %43 = vector.broadcast %42 : vector<17x1xf32> to vector<17x17xf32>
    %44 = arith.subf %40, %43 : vector<17x17xf32>
    %45 = math.exp %44 : vector<17x17xf32>
    %cst_18 = arith.constant dense<0.000000e+00> : vector<17xf32>
    %46 = vector.multi_reduction <add>, %45, %cst_18 [1] : vector<17x17xf32> to vector<17xf32>
    %47 = vector.shape_cast %46 : vector<17xf32> to vector<17x1xf32>
    %48 = vector.broadcast %47 : vector<17x1xf32> to vector<17x17xf32>
    %49 = arith.divf %45, %48 : vector<17x17xf32>
    %50 = arith.truncf %49 : vector<17x17xf32> to vector<17x17xbf16>
    %cst_19 = arith.constant dense<0.000000e+00> : vector<17x64xf32>
    %51 = tpu.matmul %50, %37, %cst_19 {dimension_numbers = #tpu.dot_dimension_numbers<[1], [0], [0], [1], [0, 0, 1, 1], [], []>} : vector<17x17xbf16>, vector<17x64xbf16>, vector<17x64xf32> -> vector<17x64xf32>
    %52 = arith.truncf %51 : vector<17x64xf32> to vector<17x64xbf16>
    %c0_20 = arith.constant 0 : index
    %c0_21 = arith.constant 0 : index
    %53 = vector.load %arg6[%c0_20, %c0_21] : memref<64x64xbf16, #tpu.memory_space<vmem>>, vector<64x64xbf16>
    %cst_22 = arith.constant dense<0.000000e+00> : vector<17x64xf32>
    %54 = tpu.matmul %52, %53, %cst_22 {dimension_numbers = #tpu.dot_dimension_numbers<[1], [0], [0], [1], [0, 0, 1, 1], [], []>} : vector<17x64xbf16>, vector<64x64xbf16>, vector<17x64xf32> -> vector<17x64xf32>
    %c0_23 = arith.constant 0 : index
    %c0_24 = arith.constant 0 : index
    %55 = vector.load %arg7[%c0_23, %c0_24] : memref<1x64xf32, #tpu.memory_space<vmem>>, vector<1x64xf32>
    %56 = vector.broadcast %55 : vector<1x64xf32> to vector<17x64xf32>
    %57 = arith.addf %54, %56 : vector<17x64xf32>
    %58 = arith.addf %1, %57 : vector<17x64xf32>
    %c0_25 = arith.constant 0 : index
    %c0_26 = arith.constant 0 : index
    %59 = vector.load %arg8[%c0_25, %c0_26] : memref<1x64xf32, #tpu.memory_space<vmem>>, vector<1x64xf32>
    %c0_27 = arith.constant 0 : index
    %c0_28 = arith.constant 0 : index
    %60 = vector.load %arg9[%c0_27, %c0_28] : memref<1x64xf32, #tpu.memory_space<vmem>>, vector<1x64xf32>
    %cst_29 = arith.constant dense<0.000000e+00> : vector<17xf32>
    %61 = vector.multi_reduction <add>, %58, %cst_29 [1] : vector<17x64xf32> to vector<17xf32>
    %62 = vector.shape_cast %61 : vector<17xf32> to vector<17x1xf32>
    %cst_30 = arith.constant 6.400000e+01 : f32
    %63 = vector.broadcast %cst_30 : f32 to vector<17x1xf32>
    %64 = arith.divf %62, %63 : vector<17x1xf32>
    %65 = vector.broadcast %64 : vector<17x1xf32> to vector<17x64xf32>
    %66 = arith.subf %58, %65 : vector<17x64xf32>
    %67 = arith.mulf %66, %66 : vector<17x64xf32>
    %cst_31 = arith.constant dense<0.000000e+00> : vector<17xf32>
    %68 = vector.multi_reduction <add>, %67, %cst_31 [1] : vector<17x64xf32> to vector<17xf32>
    %69 = vector.shape_cast %68 : vector<17xf32> to vector<17x1xf32>
    %cst_32 = arith.constant 6.400000e+01 : f32
    %70 = vector.broadcast %cst_32 : f32 to vector<17x1xf32>
    %71 = arith.divf %69, %70 : vector<17x1xf32>
    %72 = vector.broadcast %64 : vector<17x1xf32> to vector<17x64xf32>
    %73 = arith.subf %58, %72 : vector<17x64xf32>
    %cst_33 = arith.constant 9.99999974E-6 : f32
    %74 = vector.broadcast %cst_33 : f32 to vector<17x1xf32>
    %75 = arith.addf %71, %74 : vector<17x1xf32>
    %76 = math.rsqrt %75 : vector<17x1xf32>
    %77 = vector.broadcast %76 : vector<17x1xf32> to vector<17x64xf32>
    %78 = arith.mulf %73, %77 : vector<17x64xf32>
    %79 = vector.broadcast %59 : vector<1x64xf32> to vector<17x64xf32>
    %80 = arith.mulf %78, %79 : vector<17x64xf32>
    %81 = vector.broadcast %60 : vector<1x64xf32> to vector<17x64xf32>
    %82 = arith.addf %80, %81 : vector<17x64xf32>
    %83 = arith.truncf %82 : vector<17x64xf32> to vector<17x64xbf16>
    %c0_34 = arith.constant 0 : index
    %c0_35 = arith.constant 0 : index
    %84 = vector.load %arg10[%c0_34, %c0_35] : memref<64x256xbf16, #tpu.memory_space<vmem>>, vector<64x256xbf16>
    %cst_36 = arith.constant dense<0.000000e+00> : vector<17x256xf32>
    %85 = tpu.matmul %83, %84, %cst_36 {dimension_numbers = #tpu.dot_dimension_numbers<[1], [0], [0], [1], [0, 0, 1, 1], [], []>} : vector<17x64xbf16>, vector<64x256xbf16>, vector<17x256xf32> -> vector<17x256xf32>
    %c0_37 = arith.constant 0 : index
    %c0_38 = arith.constant 0 : index
    %86 = vector.load %arg11[%c0_37, %c0_38] : memref<1x256xf32, #tpu.memory_space<vmem>>, vector<1x256xf32>
    %87 = vector.broadcast %86 : vector<1x256xf32> to vector<17x256xf32>
    %88 = arith.addf %85, %87 : vector<17x256xf32>
    %cst_39 = arith.constant 1.702000e+00 : f32
    %89 = vector.broadcast %cst_39 : f32 to vector<17x256xf32>
    %90 = arith.mulf %89, %88 : vector<17x256xf32>
    %91 = arith.negf %90 : vector<17x256xf32>
    %92 = math.exp %91 : vector<17x256xf32>
    %cst_40 = arith.constant 1.000000e+00 : f32
    %93 = vector.broadcast %cst_40 : f32 to vector<17x256xf32>
    %94 = arith.addf %93, %92 : vector<17x256xf32>
    %95 = arith.divf %93, %94 : vector<17x256xf32>
    %96 = arith.mulf %88, %95 : vector<17x256xf32>
    %97 = arith.truncf %96 : vector<17x256xf32> to vector<17x256xbf16>
    %c0_41 = arith.constant 0 : index
    %c0_42 = arith.constant 0 : index
    %98 = vector.load %arg12[%c0_41, %c0_42] : memref<256x64xbf16, #tpu.memory_space<vmem>>, vector<256x64xbf16>
    %cst_43 = arith.constant dense<0.000000e+00> : vector<17x64xf32>
    %99 = tpu.matmul %97, %98, %cst_43 {dimension_numbers = #tpu.dot_dimension_numbers<[1], [0], [0], [1], [0, 0, 1, 1], [], []>} : vector<17x256xbf16>, vector<256x64xbf16>, vector<17x64xf32> -> vector<17x64xf32>
    %c0_44 = arith.constant 0 : index
    %c0_45 = arith.constant 0 : index
    %100 = vector.load %arg13[%c0_44, %c0_45] : memref<1x64xf32, #tpu.memory_space<vmem>>, vector<1x64xf32>
    %101 = vector.broadcast %100 : vector<1x64xf32> to vector<17x64xf32>
    %102 = arith.addf %99, %101 : vector<17x64xf32>
    %103 = arith.addf %58, %102 : vector<17x64xf32>
    %c0_46 = arith.constant 0 : index
    %c0_47 = arith.constant 0 : index
    %c0_48 = arith.constant 0 : index
    %104 = vector.load %arg14[%c0_46, %c0_47, %c0_48] : memref<1x17x64xf32, #tpu.memory_space<vmem>>, vector<1x17x64xf32>
    %105 = vector.shape_cast %104 : vector<1x17x64xf32> to vector<17x64xf32>
    %106 = vector.shape_cast %103 : vector<17x64xf32> to vector<1x17x64xf32>
    tpu.vector_store %arg14[%c0_46, %c0_47, %c0_48], %106 {strides = array<i32>} : memref<1x17x64xf32, #tpu.memory_space<vmem>>, vector<1x17x64xf32>,
    return
  }
  func.func @transform_0(%arg0: i32) -> (i32, i32, i32) {
    %c0_i32 = arith.constant 0 : i32
    %c0_i32_0 = arith.constant 0 : i32
    %c0_i32_1 = arith.constant 0 : i32
    return %arg0, %c0_i32, %c0_i32_0 : i32, i32, i32
  }
  func.func @transform_1(%arg0: i32) -> (i32, i32) {
    %c0_i32 = arith.constant 0 : i32
    %c0_i32_0 = arith.constant 0 : i32
    %c0_i32_1 = arith.constant 0 : i32
    return %c0_i32, %c0_i32_0 : i32, i32
  }
  func.func @transform_2(%arg0: i32) -> (i32, i32) {
    %c0_i32 = arith.constant 0 : i32
    %c0_i32_0 = arith.constant 0 : i32
    %c0_i32_1 = arith.constant 0 : i32
    return %c0_i32, %c0_i32_0 : i32, i32
  }
  func.func @transform_3(%arg0: i32) -> (i32, i32) {
    %c0_i32 = arith.constant 0 : i32
    %c0_i32_0 = arith.constant 0 : i32
    %c0_i32_1 = arith.constant 0 : i32
    return %c0_i32, %c0_i32_0 : i32, i32
  }
  func.func @transform_4(%arg0: i32) -> (i32, i32) {
    %c0_i32 = arith.constant 0 : i32
    %c0_i32_0 = arith.constant 0 : i32
    %c0_i32_1 = arith.constant 0 : i32
    return %c0_i32, %c0_i32_0 : i32, i32
  }
  func.func @transform_5(%arg0: i32) -> (i32, i32) {
    %c0_i32 = arith.constant 0 : i32
    %c0_i32_0 = arith.constant 0 : i32
    %c0_i32_1 = arith.constant 0 : i32
    return %c0_i32, %c0_i32_0 : i32, i32
  }
  func.func @transform_6(%arg0: i32) -> (i32, i32) {
    %c0_i32 = arith.constant 0 : i32
    %c0_i32_0 = arith.constant 0 : i32
    %c0_i32_1 = arith.constant 0 : i32
    return %c0_i32, %c0_i32_0 : i32, i32
  }
  func.func @transform_7(%arg0: i32) -> (i32, i32) {
    %c0_i32 = arith.constant 0 : i32
    %c0_i32_0 = arith.constant 0 : i32
    %c0_i32_1 = arith.constant 0 : i32
    return %c0_i32, %c0_i32_0 : i32, i32
  }
  func.func @transform_8(%arg0: i32) -> (i32, i32) {
    %c0_i32 = arith.constant 0 : i32
    %c0_i32_0 = arith.constant 0 : i32
    %c0_i32_1 = arith.constant 0 : i32
    return %c0_i32, %c0_i32_0 : i32, i32
  }
  func.func @transform_9(%arg0: i32) -> (i32, i32) {
    %c0_i32 = arith.constant 0 : i32
    %c0_i32_0 = arith.constant 0 : i32
    %c0_i32_1 = arith.constant 0 : i32
    return %c0_i32, %c0_i32_0 : i32, i32
  }
  func.func @transform_10(%arg0: i32) -> (i32, i32) {
    %c0_i32 = arith.constant 0 : i32
    %c0_i32_0 = arith.constant 0 : i32
    %c0_i32_1 = arith.constant 0 : i32
    return %c0_i32, %c0_i32_0 : i32, i32
  }
  func.func @transform_11(%arg0: i32) -> (i32, i32) {
    %c0_i32 = arith.constant 0 : i32
    %c0_i32_0 = arith.constant 0 : i32
    %c0_i32_1 = arith.constant 0 : i32
    return %c0_i32, %c0_i32_0 : i32, i32
  }
  func.func @transform_12(%arg0: i32) -> (i32, i32) {
    %c0_i32 = arith.constant 0 : i32
    %c0_i32_0 = arith.constant 0 : i32
    %c0_i32_1 = arith.constant 0 : i32
    return %c0_i32, %c0_i32_0 : i32, i32
  }
  func.func @transform_13(%arg0: i32) -> (i32, i32, i32) {
    %c0_i32 = arith.constant 0 : i32
    %c0_i32_0 = arith.constant 0 : i32
    %c0_i32_1 = arith.constant 0 : i32
    return %arg0, %c0_i32, %c0_i32_0 : i32, i32, i32
  }
}

module attributes {stable_mosaic.version = 11 : i64} {
  func.func @_head_kernel(%arg0: i32, %arg1: memref<2x64xf32, #tpu.memory_space<vmem>>, %arg2: memref<1x64xf32, #tpu.memory_space<vmem>>, %arg3: memref<1x64xf32, #tpu.memory_space<vmem>>, %arg4: memref<64x32xbf16, #tpu.memory_space<vmem>>, %arg5: memref<2x32xf32, #tpu.memory_space<vmem>>) attributes {dimension_semantics = [#tpu.dimension_semantics<arbitrary>], iteration_bounds = array<i64: 1>, scalar_prefetch = 0 : i64, scratch_operands = 0 : i64, tpu.core_type = #tpu.core_type<tc>, window_params = [{pipeline_mode = #tpu.pipeline_mode<synchronous>, transform_indices = @transform_0, window_bounds = array<i64: 2, 64>}, {pipeline_mode = #tpu.pipeline_mode<synchronous>, transform_indices = @transform_1, window_bounds = array<i64: 1, 64>}, {pipeline_mode = #tpu.pipeline_mode<synchronous>, transform_indices = @transform_2, window_bounds = array<i64: 1, 64>}, {pipeline_mode = #tpu.pipeline_mode<synchronous>, transform_indices = @transform_3, window_bounds = array<i64: 64, 32>}, {pipeline_mode = #tpu.pipeline_mode<synchronous>, transform_indices = @transform_4, window_bounds = array<i64: 2, 32>}]} {
    %c0 = arith.constant 0 : index
    %c0_0 = arith.constant 0 : index
    %0 = vector.load %arg1[%c0, %c0_0] : memref<2x64xf32, #tpu.memory_space<vmem>>, vector<2x64xf32>
    %c0_1 = arith.constant 0 : index
    %c0_2 = arith.constant 0 : index
    %1 = vector.load %arg2[%c0_1, %c0_2] : memref<1x64xf32, #tpu.memory_space<vmem>>, vector<1x64xf32>
    %c0_3 = arith.constant 0 : index
    %c0_4 = arith.constant 0 : index
    %2 = vector.load %arg3[%c0_3, %c0_4] : memref<1x64xf32, #tpu.memory_space<vmem>>, vector<1x64xf32>
    %cst = arith.constant dense<0.000000e+00> : vector<2xf32>
    %3 = vector.multi_reduction <add>, %0, %cst [1] : vector<2x64xf32> to vector<2xf32>
    %4 = vector.shape_cast %3 : vector<2xf32> to vector<2x1xf32>
    %cst_5 = arith.constant 6.400000e+01 : f32
    %5 = vector.broadcast %cst_5 : f32 to vector<2x1xf32>
    %6 = arith.divf %4, %5 : vector<2x1xf32>
    %7 = vector.broadcast %6 : vector<2x1xf32> to vector<2x64xf32>
    %8 = arith.subf %0, %7 : vector<2x64xf32>
    %9 = arith.mulf %8, %8 : vector<2x64xf32>
    %cst_6 = arith.constant dense<0.000000e+00> : vector<2xf32>
    %10 = vector.multi_reduction <add>, %9, %cst_6 [1] : vector<2x64xf32> to vector<2xf32>
    %11 = vector.shape_cast %10 : vector<2xf32> to vector<2x1xf32>
    %cst_7 = arith.constant 6.400000e+01 : f32
    %12 = vector.broadcast %cst_7 : f32 to vector<2x1xf32>
    %13 = arith.divf %11, %12 : vector<2x1xf32>
    %14 = vector.broadcast %6 : vector<2x1xf32> to vector<2x64xf32>
    %15 = arith.subf %0, %14 : vector<2x64xf32>
    %cst_8 = arith.constant 9.99999974E-6 : f32
    %16 = vector.broadcast %cst_8 : f32 to vector<2x1xf32>
    %17 = arith.addf %13, %16 : vector<2x1xf32>
    %18 = math.rsqrt %17 : vector<2x1xf32>
    %19 = vector.broadcast %18 : vector<2x1xf32> to vector<2x64xf32>
    %20 = arith.mulf %15, %19 : vector<2x64xf32>
    %21 = vector.broadcast %1 : vector<1x64xf32> to vector<2x64xf32>
    %22 = arith.mulf %20, %21 : vector<2x64xf32>
    %23 = vector.broadcast %2 : vector<1x64xf32> to vector<2x64xf32>
    %24 = arith.addf %22, %23 : vector<2x64xf32>
    %25 = arith.truncf %24 : vector<2x64xf32> to vector<2x64xbf16>
    %c0_9 = arith.constant 0 : index
    %c0_10 = arith.constant 0 : index
    %26 = vector.load %arg4[%c0_9, %c0_10] : memref<64x32xbf16, #tpu.memory_space<vmem>>, vector<64x32xbf16>
    %cst_11 = arith.constant dense<0.000000e+00> : vector<2x32xf32>
    %27 = tpu.matmul %25, %26, %cst_11 {dimension_numbers = #tpu.dot_dimension_numbers<[1], [0], [0], [1], [0, 0, 1, 1], [], []>} : vector<2x64xbf16>, vector<64x32xbf16>, vector<2x32xf32> -> vector<2x32xf32>
    %c0_12 = arith.constant 0 : index
    %c0_13 = arith.constant 0 : index
    %28 = vector.load %arg5[%c0_12, %c0_13] : memref<2x32xf32, #tpu.memory_space<vmem>>, vector<2x32xf32>
    tpu.vector_store %arg5[%c0_12, %c0_13], %27 {strides = array<i32>} : memref<2x32xf32, #tpu.memory_space<vmem>>, vector<2x32xf32>,
    return
  }
  func.func @transform_0(%arg0: i32) -> (i32, i32) {
    %c0_i32 = arith.constant 0 : i32
    %c0_i32_0 = arith.constant 0 : i32
    %c0_i32_1 = arith.constant 0 : i32
    return %c0_i32, %c0_i32_0 : i32, i32
  }
  func.func @transform_1(%arg0: i32) -> (i32, i32) {
    %c0_i32 = arith.constant 0 : i32
    %c0_i32_0 = arith.constant 0 : i32
    %c0_i32_1 = arith.constant 0 : i32
    return %c0_i32, %c0_i32_0 : i32, i32
  }
  func.func @transform_2(%arg0: i32) -> (i32, i32) {
    %c0_i32 = arith.constant 0 : i32
    %c0_i32_0 = arith.constant 0 : i32
    %c0_i32_1 = arith.constant 0 : i32
    return %c0_i32, %c0_i32_0 : i32, i32
  }
  func.func @transform_3(%arg0: i32) -> (i32, i32) {
    %c0_i32 = arith.constant 0 : i32
    %c0_i32_0 = arith.constant 0 : i32
    %c0_i32_1 = arith.constant 0 : i32
    return %c0_i32, %c0_i32_0 : i32, i32
  }
  func.func @transform_4(%arg0: i32) -> (i32, i32) {
    %c0_i32 = arith.constant 0 : i32
    %c0_i32_0 = arith.constant 0 : i32
    %c0_i32_1 = arith.constant 0 : i32
    return %c0_i32, %c0_i32_0 : i32, i32
  }
}

</mosaic_0001>

<llo_original>
// kernel: vit_forward.7
$region0: #{vit_forward.7}
  #allocation0 [shape = 'u32[]', space=smem, size = 0x4, offset = 0x4, fixed_abs, tag = 'smem constant byte address 0x4 - core index']
  #allocation1 [shape = 'u32[72,128]{1,0:T(1,128)}', space=vmem, size = 0x9000, scoped, tag = 'internal scratch']
  %s0 = inlined_call_operand.vmem [shape: f32[2,64], index: 0, kind: input, shape index: {}]
  %s1 = inlined_call_operand.vmem [shape: f32[1,64], index: 1, kind: input, shape index: {}]
  %s2 = inlined_call_operand.vmem [shape: f32[1,64], index: 2, kind: input, shape index: {}]
  %s3 = inlined_call_operand.vmem [shape: bf16[64,32], index: 3, kind: input, shape index: {}]
  %s4 = inlined_call_operand.hbm [shape: f32[2,32], index: 4, kind: output, shape index: {}]
  %s5 = sld [smem:[#allocation0]]
  $region26: #{vit_forward.7} parent=0
    _
  %s7 = ssub.s32 1, %s5
  %s8 = scalar_select 0, %s7, %s5
  $region1: #{vit_forward.7} parent=0
    #allocation2 [shape = 'u8[1024]{0}', space=vmem, size = 0x400, scoped, tag = 'output window, operand 0, single buffered']
    #allocation3 [shape = 's32[1]{0}', space=sflag, size = 0x4, scoped, tag = 'scoped memory for vit_forward.7']
    %9 = vsyncpa [#allocation3], 0
    // Predicated region
    $region2: #{vit_forward.7} parent=1 // pred_check
      _
    $region3: #{vit_forward.7} parent=1 // pred_check_branch
      %11 = sbr.rel (0) target = $region5
    $region4: #{vit_forward.7} parent=1 // pred_region
      _
    $region5: #{vit_forward.7} parent=1 // pred_fallthru
      _
    // Predicated region
    $region6: #{vit_forward.7} parent=1 // pred_check
      _
    $region7: #{vit_forward.7} parent=1 // pred_check_branch
      %13 = sbr.rel (0) target = $region9
    $region8: #{vit_forward.7} parent=1 // pred_region
      _
    $region9: #{vit_forward.7} parent=1 // pred_fallthru
      _
    // Predicated region
    $region10: #{vit_forward.7} parent=1 // pred_check
      _
    $region11: #{vit_forward.7} parent=1 // pred_check_branch
      %15 = sbr.rel (0) target = $region13
    $region12: #{vit_forward.7} parent=1 // pred_region
      _
    $region13: #{vit_forward.7} parent=1 // pred_fallthru
      _
    // Predicated region
    $region14: #{vit_forward.7} parent=1 // pred_check
      _
    $region15: #{vit_forward.7} parent=1 // pred_check_branch
      %17 = sbr.rel (0) target = $region17
    $region16: #{vit_forward.7} parent=1 // pred_region
      _
    $region17: #{vit_forward.7} parent=1 // pred_fallthru
      _
    %v19 = vld [vmem:[%s0] sm:$0x3]
    %v20 = vld [vmem:[%s1] sm:$0x1]
    %v21 = vld [vmem:[%s2] sm:$0x1]
    %vm22 = vcmask 517120
    %v23 = vsel %vm22, %v19, 0.0
    %24 = vadd.xlane.f32.xlu0 %v23
    %v25 = vpop.xlane.xlu0 %24
    %v26 = vrcp.pop 64.0
    %v27 = vmul.f32 64.0, %v26
    %v28 = vsub.f32 1.0, %v27
    %v29 = vmul.f32 %v26, %v28
    %v30 = vadd.f32 %v26, %v29
    %vm31 = vweird.f32 %v26
    %v32 = vsel %vm31, %v26, %v30
    %v33 = vmul.f32 %v25, %v32
    %v34 = vsub.f32 %v19, %v33
    %v35 = vmul.f32 %v34, %v34
    %v36 = vsel %vm22, %v35, 0.0
    %37 = vadd.xlane.f32.xlu0 %v36
    %v38 = vpop.xlane.xlu0 %37
    %v39 = vmul.f32 %v38, %v32
    %v40 = vadd.f32 %v39, 1e-05
    %v41 = vrsqrt.pop %v40
    %v42 = vmul.f32 %v41, %v40
    %v43 = vmul.f32 %v42, %v41
    %v44 = vmul.f32 0.5, %v43
    %v45 = vsub.f32 1.5, %v44
    %v46 = vmul.f32 %v41, %v45
    %vm47 = vweird.f32 %v40
    %vm48 = vweird.f32 %v41
    %vm49 = vmor %vm47, %vm48
    %v50 = vsel %vm49, %v41, %v46
    %v51 = vmul.f32 %v34, %v50
    %v53 = vperm.slane %v20, 0
    %v55 = vmul.f32 %v51, %v53
    %v57 = vperm.slane %v21, 0
    %v59 = vadd.f32 %v55, %v57
    %v60 = vpack.c.bf16 %v59, %v59
    %v61 = vld [vmem:[%s3] sm:$0xf]
    %v62 = vld [vmem:[%s3 + $0x4] sm:$0xf]
    %v63 = vld [vmem:[%s3 + $0x8] sm:$0xf]
    %v64 = vld [vmem:[%s3 + $0xc] sm:$0xf]
    %v65 = vld [vmem:[%s3 + $0x10] sm:$0xf]
    %v66 = vld [vmem:[%s3 + $0x14] sm:$0xf]
    %v67 = vld [vmem:[%s3 + $0x18] sm:$0xf]
    %v68 = vld [vmem:[%s3 + $0x1c] sm:$0xf]
    %v77 = vunpack.c.l.b16 %v61
    %v78 = vunpack.c.l.b16 %v62
    %v79 = vunpack.c.l.b16 %v63
    %v80 = vunpack.c.l.b16 %v64
    %v81 = vunpack.c.l.b16 %v65
    %v82 = vunpack.c.l.b16 %v66
    %v83 = vunpack.c.l.b16 %v67
    %v84 = vunpack.c.l.b16 %v68
    %v85 = vpack.c.b16 %v78, %v77
    %v86 = vpack.c.b16 %v80, %v79
    %v87 = vpack.c.b16 %v82, %v81
    %v88 = vpack.c.b16 %v84, %v83
    %vm93 = vcmask 523264
    %v95 = vsel %vm93, %v60, 0
    %97 = vmatpush.bf16.msra.mxu0 0
    %98 = vmatpush.bf16.msra.mxu0 0
    %99 = vmatpush.bf16.msra.mxu0 0
    %100 = vmatpush.bf16.msra.mxu0 0
    %101 = vmatpush.bf16.msra.mxu0 %v88
    %102 = vmatpush.bf16.msra.mxu0 %v87
    %103 = vmatpush.bf16.msra.mxu0 %v86
    %104 = vmatpush.bf16.msra.mxu0 %v85
    %105 = vmatmul.bf16.gmra.mxu0 %v95
    %v106 = vpop.f32.mrf.mxu0
    %v107 = vadd.f32 0.0, %v106
    %v108 = vpop.f32.mrf.mxu0
    %109 = vdwg.mxu0
    %vm110 = vcmask 254976
    %111 = vst.msk [vmem:[#allocation2] sm:$0x3] %vm110, %v107
    // Predicated region
    $region18: #{vit_forward.7} parent=1 // pred_check
      _
    $region19: #{vit_forward.7} parent=1 // pred_check_branch
      %113 = sbr.rel (0) target = $region21
    $region20: #{vit_forward.7} parent=1 // pred_region
      %115 = vsyncadd [#allocation3], 0
      %s117 = sshll.u32 [#allocation2], 4
      %s118 = int_to_ptr.vmem [resolvable:$true] %s117
      %s119 = sshll.u32 %s4, 4
      %s120 = int_to_ptr.hbm [resolvable:$true] %s119
      %122 = dma.vmem_to_hbm [thread:$0]  %s118, 32, %s120, [#allocation3]
    $region21: #{vit_forward.7} parent=1 // pred_fallthru
      _
    // Predicated region
    $region22: #{vit_forward.7} parent=1 // pred_check
      _
    $region23: #{vit_forward.7} parent=1 // pred_check_branch
      %124 = sbr.rel (0) target = $region25
    $region24: #{vit_forward.7} parent=1 // pred_region
      %126 = dma.done [#allocation3], 32
    $region25: #{vit_forward.7} parent=1 // pred_fallthru
      _
    %127 = vsyncpa [#allocation3], 1

// kernel: vit_forward.4
$region0: #{vit_forward.4}
  #allocation0 [shape = 'u32[]', space=smem, size = 0x4, offset = 0x4, fixed_abs, tag = 'smem constant byte address 0x4 - core index']
  #allocation1 [shape = 'u32[72,128]{1,0:T(1,128)}', space=vmem, size = 0x9000, scoped, tag = 'internal scratch']
  %s0 = inlined_call_operand.vmem [shape: f32[2,17,48], index: 0, kind: input, shape index: {}]
  %s1 = inlined_call_operand.vmem [shape: bf16[48,64], index: 1, kind: input, shape index: {}]
  %s2 = inlined_call_operand.vmem [shape: f32[1,64], index: 2, kind: input, shape index: {}]
  %s3 = inlined_call_operand.vmem [shape: f32[17,64], index: 3, kind: input, shape index: {}]
  %s4 = inlined_call_operand.vmem [shape: f32[1,64], index: 4, kind: input, shape index: {}]
  %s5 = inlined_call_operand.vmem [shape: f32[1,64], index: 5, kind: input, shape index: {}]
  %s6 = inlined_call_operand.vmem [shape: f32[2,17,64], index: 6, kind: output, shape index: {}]
  %s7 = sld [smem:[#allocation0]]
  $region57: #{vit_forward.4} parent=0
    _
  %s9 = ssub.s32 1, %s7
  %s10 = scalar_select 0, %s9, %s7
  loop: start=0, step=1, limit=4
  $region2: #{vit_forward.4} parent=0 // loop_pre_header
    _
  $region3: #{vit_forward.4} parent=0 // loop_header
    %s12 = sphi 0, %s16
    %p13 = scmp.ge.s32.totalorder %s12, 4
    %s22 = sphi 0, %s24
    %s25 = sphi 0, %s22
    %s26 = sphi 0, %s25
    %s42 = sphi 0, %s26
    %s46 = sphi 0, %s46
    %s48 = sphi 0, %s46
    %s49 = sphi 0, %s48
    %s63 = sphi 0, %s49
    %s67 = sphi 0, %s67
    %s69 = sphi 0, %s67
    %s70 = sphi 0, %s69
    %s84 = sphi 0, %s70
    %s88 = sphi 0, %s88
    %s90 = sphi 0, %s88
    %s91 = sphi 0, %s90
    %s105 = sphi 0, %s91
    %s109 = sphi 0, %s109
    %s111 = sphi 0, %s109
    %s112 = sphi 0, %s111
    %s126 = sphi 0, %s112
    %s130 = sphi 0, %s130
    %s132 = sphi 0, %s130
    %s133 = sphi 0, %s132
    %s147 = sphi 0, %s133
    %s153 = sphi 0, %s155
    %s156 = sphi 0, %s153
    %s157 = sphi 0, %s156
    %s173 = sphi 0, %s157
  $region4: #{vit_forward.4} parent=0 // loop_header_branch
    %15 = sbr.rel (%p13) target = $region8
  $region5: #{vit_forward.4} parent=0 // loop_body
    %s17 = ssub.s32 %s12, 1
    %s18 = ssub.s32 %s12, 2
    %s19 = sadd.s32 %s12, 1
    %s20 = ssub.s32 %s12, %s19
    %p21 = scmp.eq.s32.totalorder %s20, 0
    %s23 = sadd.s32 %s22, 1
    %s24 = scalar_select %p21, %s22, %s23
    %p27 = pneg %p21
    %p28 = scmp.eq.s32.totalorder %s12, 1
    %p29 = por %p27, %p28
    %p30 = scmp.ne.s32.totalorder %s22, %s25
    %p31 = scmp.eq.s32.totalorder %s12, 0
    %p32 = por %p30, %p31
    %p33 = scmp.ne.s32.totalorder %s22, %s25
    %p34 = scmp.eq.s32.totalorder %s17, 1
    %p35 = por %p33, %p34
    %p36 = scmp.ne.s32.totalorder %s25, %s26
    %p37 = scmp.eq.s32.totalorder %s17, 0
    %p38 = por %p36, %p37
    %p39 = scmp.ne.s32.totalorder %s25, %s26
    %p40 = scmp.eq.s32.totalorder %s18, 1
    %p41 = por %p39, %p40
    %p43 = scmp.ne.s32.totalorder %s26, %s42
    %p44 = scmp.eq.s32.totalorder %s18, 0
    %p45 = por %p43, %p44
    %s47 = sadd.s32 %s46, 1
    %p50 = scmp.eq.s32.totalorder %s12, 1
    %p51 = scmp.ne.s32.totalorder %s46, %s48
    %p52 = scmp.eq.s32.totalorder %s12, 0
    %p53 = por %p51, %p52
    %p54 = scmp.ne.s32.totalorder %s46, %s48
    %p55 = scmp.eq.s32.totalorder %s17, 1
    %p56 = por %p54, %p55
    %p57 = scmp.ne.s32.totalorder %s48, %s49
    %p58 = scmp.eq.s32.totalorder %s17, 0
    %p59 = por %p57, %p58
    %p60 = scmp.ne.s32.totalorder %s48, %s49
    %p61 = scmp.eq.s32.totalorder %s18, 1
    %p62 = por %p60, %p61
    %p64 = scmp.ne.s32.totalorder %s49, %s63
    %p65 = scmp.eq.s32.totalorder %s18, 0
    %p66 = por %p64, %p65
    %s68 = sadd.s32 %s67, 1
    %p71 = scmp.eq.s32.totalorder %s12, 1
    %p72 = scmp.ne.s32.totalorder %s67, %s69
    %p73 = scmp.eq.s32.totalorder %s12, 0
    %p74 = por %p72, %p73
    %p75 = scmp.ne.s32.totalorder %s67, %s69
    %p76 = scmp.eq.s32.totalorder %s17, 1
    %p77 = por %p75, %p76
    %p78 = scmp.ne.s32.totalorder %s69, %s70
    %p79 = scmp.eq.s32.totalorder %s17, 0
    %p80 = por %p78, %p79
    %p81 = scmp.ne.s32.totalorder %s69, %s70
    %p82 = scmp.eq.s32.totalorder %s18, 1
    %p83 = por %p81, %p82
    %p85 = scmp.ne.s32.totalorder %s70, %s84
    %p86 = scmp.eq.s32.totalorder %s18, 0
    %p87 = por %p85, %p86
    %s89 = sadd.s32 %s88, 1
    %p92 = scmp.eq.s32.totalorder %s12, 1
    %p93 = scmp.ne.s32.totalorder %s88, %s90
    %p94 = scmp.eq.s32.totalorder %s12, 0
    %p95 = por %p93, %p94
    %p96 = scmp.ne.s32.totalorder %s88, %s90
    %p97 = scmp.eq.s32.totalorder %s17, 1
    %p98 = por %p96, %p97
    %p99 = scmp.ne.s32.totalorder %s90, %s91
    %p100 = scmp.eq.s32.totalorder %s17, 0
    %p101 = por %p99, %p100
    %p102 = scmp.ne.s32.totalorder %s90, %s91
    %p103 = scmp.eq.s32.totalorder %s18, 1
    %p104 = por %p102, %p103
    %p106 = scmp.ne.s32.totalorder %s91, %s105
    %p107 = scmp.eq.s32.totalorder %s18, 0
    %p108 = por %p106, %p107
    %s110 = sadd.s32 %s109, 1
    %p113 = scmp.eq.s32.totalorder %s12, 1
    %p114 = scmp.ne.s32.totalorder %s109, %s111
    %p115 = scmp.eq.s32.totalorder %s12, 0
    %p116 = por %p114, %p115
    %p117 = scmp.ne.s32.totalorder %s109, %s111
    %p118 = scmp.eq.s32.totalorder %s17, 1
    %p119 = por %p117, %p118
    %p120 = scmp.ne.s32.totalorder %s111, %s112
    %p121 = scmp.eq.s32.totalorder %s17, 0
    %p122 = por %p120, %p121
    %p123 = scmp.ne.s32.totalorder %s111, %s112
    %p124 = scmp.eq.s32.totalorder %s18, 1
    %p125 = por %p123, %p124
    %p127 = scmp.ne.s32.totalorder %s112, %s126
    %p128 = scmp.eq.s32.totalorder %s18, 0
    %p129 = por %p127, %p128
    %s131 = sadd.s32 %s130, 1
    %p134 = scmp.eq.s32.totalorder %s12, 1
    %p135 = scmp.ne.s32.totalorder %s130, %s132
    %p136 = scmp.eq.s32.totalorder %s12, 0
    %p137 = por %p135, %p136
    %p138 = scmp.ne.s32.totalorder %s130, %s132
    %p139 = scmp.eq.s32.totalorder %s17, 1
    %p140 = por %p138, %p139
    %p141 = scmp.ne.s32.totalorder %s132, %s133
    %p142 = scmp.eq.s32.totalorder %s17, 0
    %p143 = por %p141, %p142
    %p144 = scmp.ne.s32.totalorder %s132, %s133
    %p145 = scmp.eq.s32.totalorder %s18, 1
    %p146 = por %p144, %p145
    %p148 = scmp.ne.s32.totalorder %s133, %s147
    %p149 = scmp.eq.s32.totalorder %s18, 0
    %p150 = por %p148, %p149
    %s151 = ssub.s32 %s12, %s19
    %p152 = scmp.eq.s32.totalorder %s151, 0
    %s154 = sadd.s32 %s153, 1
    %s155 = scalar_select %p152, %s153, %s154
    %p158 = pneg %p152
    %p159 = scmp.eq.s32.totalorder %s12, 1
    %p160 = por %p158, %p159
    %p161 = scmp.ne.s32.totalorder %s153, %s156
    %p162 = scmp.eq.s32.totalorder %s12, 0
    %p163 = por %p161, %p162
    %p164 = scmp.ne.s32.totalorder %s153, %s156
    %p165 = scmp.eq.s32.totalorder %s17, 1
    %p166 = por %p164, %p165
    %p167 = scmp.ne.s32.totalorder %s156, %s157
    %p168 = scmp.eq.s32.totalorder %s17, 0
    %p169 = por %p167, %p168
    %p170 = scmp.ne.s32.totalorder %s156, %s157
    %p171 = scmp.eq.s32.totalorder %s18, 1
    %p172 = por %p170, %p171
    %p174 = scmp.ne.s32.totalorder %s157, %s173
    %p175 = scmp.eq.s32.totalorder %s18, 0
    %p176 = por %p174, %p175
    %p177 = scmp.le.s32.totalorder 1, %s12
    %p178 = scmp.lt.s32.totalorder %s12, 3
    %p179 = pnand %p177, %p178
    %p180 = pneg %p179
    // Predicated region
    $region9: #{vit_forward.4} parent=5 // pred_check
      _
    $region10: #{vit_forward.4} parent=5 // pred_check_branch
      %182 = sbr.rel (%p179) target = $region12
    $region11: #{vit_forward.4} parent=5 // pred_region
      %s183 = ssub.s32 %s12, 1
      // Predicated region
      $region13: #{vit_forward.4} parent=11 // pred_check
        %p184 = pneg %p59
      $region14: #{vit_forward.4} parent=11 // pred_check_branch
        %186 = sbr.rel (%p184) target = $region16
      $region15: #{vit_forward.4} parent=11 // pred_region
        _
      $region16: #{vit_forward.4} parent=11 // pred_fallthru
        _
      // Predicated region
      $region17: #{vit_forward.4} parent=11 // pred_check
        %p187 = pneg %p80
      $region18: #{vit_forward.4} parent=11 // pred_check_branch
        %189 = sbr.rel (%p187) target = $region20
      $region19: #{vit_forward.4} parent=11 // pred_region
        _
      $region20: #{vit_forward.4} parent=11 // pred_fallthru
        _
      // Predicated region
      $region21: #{vit_forward.4} parent=11 // pred_check
        %p190 = pneg %p101
      $region22: #{vit_forward.4} parent=11 // pred_check_branch
        %192 = sbr.rel (%p190) target = $region24
      $region23: #{vit_forward.4} parent=11 // pred_region
        _
      $region24: #{vit_forward.4} parent=11 // pred_fallthru
        _
      // Predicated region
      $region25: #{vit_forward.4} parent=11 // pred_check
        %p193 = pneg %p122
      $region26: #{vit_forward.4} parent=11 // pred_check_branch
        %195 = sbr.rel (%p193) target = $region28
      $region27: #{vit_forward.4} parent=11 // pred_region
        _
      $region28: #{vit_forward.4} parent=11 // pred_fallthru
        _
      // Predicated region
      $region29: #{vit_forward.4} parent=11 // pred_check
        %p196 = pneg %p143
      $region30: #{vit_forward.4} parent=11 // pred_check_branch
        %198 = sbr.rel (%p196) target = $region32
      $region31: #{vit_forward.4} parent=11 // pred_region
        _
      $region32: #{vit_forward.4} parent=11 // pred_fallthru
        _
    $region12: #{vit_forward.4} parent=5 // pred_fallthru
      _
    %p199 = scmp.lt.s32.totalorder %s12, 2
    // Predicated region
    $region33: #{vit_forward.4} parent=5 // pred_check
      %p200 = pneg %p199
    $region34: #{vit_forward.4} parent=5 // pred_check_branch
      %202 = sbr.rel (%p200) target = $region36
    $region35: #{vit_forward.4} parent=5 // pred_region
      // Predicated region
      $region37: #{vit_forward.4} parent=35 // pred_check
        %p203 = pneg %p32
      $region38: #{vit_forward.4} parent=35 // pred_check_branch
        %205 = sbr.rel (%p203) target = $region40
      $region39: #{vit_forward.4} parent=35 // pred_region
        %p206 = scmp.lt.s32.totalorder %s12, 1
        %s207 = scalar_select %p206, %s12, 1
        %s208 = smul.addr %s207, 3
        %s209 = smul.addr %s208, 8
        %s210 = scalar_lea.vmem %s0, %s209
      $region40: #{vit_forward.4} parent=35 // pred_fallthru
        _
    $region36: #{vit_forward.4} parent=5 // pred_fallthru
      _
    %p211 = scmp.le.s32.totalorder 1, %s12
    %p212 = scmp.lt.s32.totalorder %s12, 3
    %p213 = pnand %p211, %p212
    %p214 = pneg %p213
    // Predicated region
    $region41: #{vit_forward.4} parent=5 // pred_check
      _
    $region42: #{vit_forward.4} parent=5 // pred_check_branch
      %216 = sbr.rel (%p213) target = $region44
    $region43: #{vit_forward.4} parent=5 // pred_region
      %s217 = ssub.s32 %s12, 1
      %p218 = scmp.lt.s32.totalorder %s17, 1
      %s219 = scalar_select %p218, %s17, 1
      %s220 = smul.addr %s219, 3
      %s221 = smul.addr %s220, 8
      %s222 = scalar_lea.vmem %s0, %s221
      %p223 = pneg %p38
      %p224 = pneg %p35
      %p225 = pneg %p59
      %p226 = pneg %p56
      %p227 = pneg %p80
      %p228 = pneg %p77
      %p229 = pneg %p101
      %p230 = pneg %p98
      %p231 = pneg %p122
      %p232 = pneg %p119
      %p233 = pneg %p143
      %p234 = pneg %p140
      %p235 = pneg %p169
      %p236 = pneg %p166
      %p237 = scmp.lt.s32.totalorder %s17, 1
      %s238 = scalar_select %p237, %s17, 1
      %s239 = smul.addr %s238, 3
      %s240 = smul.addr %s239, 8
      %s241 = scalar_lea.vmem %s6, %s240
      %p242 = scmp.lt.s32.totalorder %s17, 1
      %s243 = scalar_select %p242, %s17, 1
      %s244 = smul.addr %s243, 3
      %s245 = smul.addr %s244, 8
      %s246 = scalar_lea.vmem %s0, %s245
      %p247 = scmp.lt.s32.totalorder %s17, 1
      %s248 = scalar_select %p247, %s17, 1
      %s249 = smul.addr %s248, 3
      %s250 = smul.addr %s249, 8
      %s251 = scalar_lea.vmem %s6, %s250
      %v253 = vld [vmem:[%s246] sm:$0xff]
      %v254 = vld [vmem:[%s246 + $0x8] sm:$0xff]
      %v255 = vld [vmem:[%s246 + $0x10] sm:$0x1]
      %v256 = vpack.c.bf16 %v254, %v253
      %v257 = vpack.c.bf16 %v255, %v255
      %v258 = vld [vmem:[%s1] sm:$0xf]
      %v259 = vld [vmem:[%s1 + $0x4] sm:$0xf]
      %v260 = vld [vmem:[%s1 + $0x8] sm:$0xf]
      %v261 = vld [vmem:[%s1 + $0xc] sm:$0xf]
      %v262 = vld [vmem:[%s1 + $0x10] sm:$0xf]
      %v263 = vld [vmem:[%s1 + $0x14] sm:$0xf]
      %v270 = vunpack.c.l.b16 %v258
      %v271 = vunpack.c.l.b16 %v259
      %v272 = vunpack.c.l.b16 %v260
      %v273 = vunpack.c.l.b16 %v261
      %v274 = vunpack.c.l.b16 %v262
      %v275 = vunpack.c.l.b16 %v263
      %v276 = vpack.c.b16 %v271, %v270
      %v277 = vpack.c.b16 %v273, %v272
      %v278 = vpack.c.b16 %v275, %v274
      %vm282 = vcmask 392192
      %v284 = vsel %vm282, %v256, 0
      %v287 = vsel %vm282, %v257, 0
      %289 = vmatpush.bf16.msra.mxu0 0
      %290 = vmatpush.bf16.msra.mxu0 0
      %291 = vmatpush.bf16.msra.mxu0 0
      %292 = vmatpush.bf16.msra.mxu0 0
      %293 = vmatpush.bf16.msra.mxu0 0
      %294 = vmatpush.bf16.msra.mxu0 %v278
      %295 = vmatpush.bf16.msra.mxu0 %v277
      %296 = vmatpush.bf16.msra.mxu0 %v276
      %297 = vmatmul.bf16.gmra.mxu0 %v284
      %v298 = vpop.f32.mrf.mxu0
      %v299 = vadd.f32 0.0, %v298
      %v300 = vpop.f32.mrf.mxu0
      %v301 = vadd.f32 0.0, %v300
      %302 = vmatmul.bf16.gmra.mxu0 %v287
      %v303 = vpop.f32.mrf.mxu0
      %v304 = vadd.f32 0.0, %v303
      %v305 = vpop.f32.mrf.mxu0
      %306 = vdwg.mxu0
      %v307 = vlaneseq
      %v308 = vshrl.u32 %v307, 7
      %v309 = vadd.s32 %v308, 8
      %v310 = vadd.s32 %v308, 16
      %v311 = vld [vmem:[%s2] sm:$0x1]
      %v313 = vperm.slane %v311, 0
      %vm315 = vcmp.eq.s32.totalorder %v308, 0
      %vm316 = vcmp.eq.s32.totalorder %v309, 0
      %vm317 = vcmp.eq.s32.totalorder %v310, 0
      %v318 = vsel %vm315, %v313, %v299
      %v319 = vsel %vm316, %v313, %v301
      %v320 = vsel %vm317, %v313, %v304
      %v321 = vld [vmem:[%s3] sm:$0xff]
      %v322 = vld [vmem:[%s3 + $0x8] sm:$0xff]
      %v323 = vld [vmem:[%s3 + $0x10] sm:$0x1]
      %v324 = vadd.f32 %v318, %v321
      %v325 = vadd.f32 %v319, %v322
      %v326 = vadd.f32 %v320, %v323
      %v327 = vld [vmem:[%s4] sm:$0x1]
      %v328 = vld [vmem:[%s5] sm:$0x1]
      %vm329 = vcmask 523264
      %v330 = vsel %vm329, %v324, 0.0
      %331 = vadd.xlane.f32.xlu0 %v330
      %v332 = vpop.xlane.xlu0 %331
      %v333 = vsel %vm329, %v325, 0.0
      %334 = vadd.xlane.f32.xlu0 %v333
      %v335 = vpop.xlane.xlu0 %334
      %vm336 = vcmask 516096
      %v337 = vsel %vm336, %v326, 0.0
      %338 = vadd.xlane.f32.xlu0 %v337
      %v339 = vpop.xlane.xlu0 %338
      %v340 = vrcp.pop 64.0
      %v341 = vmul.f32 64.0, %v340
      %v342 = vsub.f32 1.0, %v341
      %v343 = vmul.f32 %v340, %v342
      %v344 = vadd.f32 %v340, %v343
      %vm345 = vweird.f32 %v340
      %v346 = vsel %vm345, %v340, %v344
      %v347 = vmul.f32 %v332, %v346
      %v348 = vmul.f32 %v335, %v346
      %v349 = vmul.f32 %v339, %v346
      %v350 = vsub.f32 %v324, %v347
      %v351 = vsub.f32 %v325, %v348
      %v352 = vsub.f32 %v326, %v349
      %v353 = vmul.f32 %v350, %v350
      %v354 = vmul.f32 %v351, %v351
      %v355 = vmul.f32 %v352, %v352
      %v356 = vsel %vm329, %v353, 0.0
      %357 = vadd.xlane.f32.xlu0 %v356
      %v358 = vpop.xlane.xlu0 %357
      %v359 = vsel %vm329, %v354, 0.0
      %360 = vadd.xlane.f32.xlu0 %v359
      %v361 = vpop.xlane.xlu0 %360
      %v362 = vsel %vm336, %v355, 0.0
      %363 = vadd.xlane.f32.xlu0 %v362
      %v364 = vpop.xlane.xlu0 %363
      %v365 = vmul.f32 %v358, %v346
      %v366 = vmul.f32 %v361, %v346
      %v367 = vmul.f32 %v364, %v346
      %v368 = vadd.f32 %v365, 1e-05
      %v369 = vadd.f32 %v366, 1e-05
      %v370 = vadd.f32 %v367, 1e-05
      %v371 = vrsqrt.pop %v368
      %v372 = vmul.f32 %v371, %v368
      %v373 = vmul.f32 %v372, %v371
      %v374 = vmul.f32 0.5, %v373
      %v375 = vsub.f32 1.5, %v374
      %v376 = vmul.f32 %v371, %v375
      %vm377 = vweird.f32 %v368
      %vm378 = vweird.f32 %v371
      %vm379 = vmor %vm377, %vm378
      %v380 = vsel %vm379, %v371, %v376
      %v381 = vrsqrt.pop %v369
      %v382 = vmul.f32 %v381, %v369
      %v383 = vmul.f32 %v382, %v381
      %v384 = vmul.f32 0.5, %v383
      %v385 = vsub.f32 1.5, %v384
      %v386 = vmul.f32 %v381, %v385
      %vm387 = vweird.f32 %v369
      %vm388 = vweird.f32 %v381
      %vm389 = vmor %vm387, %vm388
      %v390 = vsel %vm389, %v381, %v386
      %v391 = vrsqrt.pop %v370
      %v392 = vmul.f32 %v391, %v370
      %v393 = vmul.f32 %v392, %v391
      %v394 = vmul.f32 0.5, %v393
      %v395 = vsub.f32 1.5, %v394
      %v396 = vmul.f32 %v391, %v395
      %vm397 = vweird.f32 %v370
      %vm398 = vweird.f32 %v391
      %vm399 = vmor %vm397, %vm398
      %v400 = vsel %vm399, %v391, %v396
      %v401 = vmul.f32 %v350, %v380
      %v402 = vmul.f32 %v351, %v390
      %v403 = vmul.f32 %v352, %v400
      %v405 = vperm.slane %v327, 0
      %v407 = vmul.f32 %v401, %v405
      %v408 = vmul.f32 %v402, %v405
      %v409 = vmul.f32 %v403, %v405
      %v411 = vperm.slane %v328, 0
      %v413 = vadd.f32 %v407, %v411
      %v414 = vadd.f32 %v408, %v411
      %v415 = vadd.f32 %v409, %v411
      %416 = vst.msk [vmem:[%s251] sm:$0xff] %vm329, %v413
      %417 = vst.msk [vmem:[%s251 + $0x8] sm:$0xff] %vm329, %v414
      %418 = vst.msk [vmem:[%s251 + $0x10] sm:$0x1] %vm336, %v415
      %p419 = scmp.lt.s32.totalorder %s17, 1
      %s420 = scalar_select %p419, %s17, 1
      %s421 = smul.addr %s420, 3
      %s422 = smul.addr %s421, 8
      %s423 = scalar_lea.vmem %s6, %s422
      // Predicated region
      $region45: #{vit_forward.4} parent=43 // pred_check
        %p424 = pneg %p166
      $region46: #{vit_forward.4} parent=43 // pred_check_branch
        %426 = sbr.rel (%p424) target = $region48
      $region47: #{vit_forward.4} parent=43 // pred_region
        _
      $region48: #{vit_forward.4} parent=43 // pred_fallthru
        _
    $region44: #{vit_forward.4} parent=5 // pred_fallthru
      _
    %p427 = scmp.le.s32.totalorder 2, %s12
    // Predicated region
    $region49: #{vit_forward.4} parent=5 // pred_check
      %p428 = pneg %p427
    $region50: #{vit_forward.4} parent=5 // pred_check_branch
      %430 = sbr.rel (%p428) target = $region52
    $region51: #{vit_forward.4} parent=5 // pred_region
      %s431 = ssub.s32 %s12, 2
      // Predicated region
      $region53: #{vit_forward.4} parent=51 // pred_check
        %p432 = pneg %p172
      $region54: #{vit_forward.4} parent=51 // pred_check_branch
        %434 = sbr.rel (%p432) target = $region56
      $region55: #{vit_forward.4} parent=51 // pred_region
        %p435 = scmp.lt.s32.totalorder %s18, 1
        %s436 = scalar_select %p435, %s18, 1
        %s437 = smul.addr %s436, 3
        %s438 = smul.addr %s437, 8
        %s439 = scalar_lea.vmem %s6, %s438
      $region56: #{vit_forward.4} parent=51 // pred_fallthru
        _
    $region52: #{vit_forward.4} parent=5 // pred_fallthru
      _
  $region6: #{vit_forward.4} parent=0 // loop_footer
    %s16 = sadd.s32 1, %s12
  $region7: #{vit_forward.4} parent=0 // loop_footer_branch
    %11 = sbr.rel target = $region3
  $region8: #{vit_forward.4} parent=0 // loop_exit
    _

// kernel: vit_forward.5
$region0: #{vit_forward.5}
  #allocation0 [shape = 'u32[]', space=smem, size = 0x4, offset = 0x4, fixed_abs, tag = 'smem constant byte address 0x4 - core index']
  #allocation1 [shape = 'u32[72,128]{1,0:T(1,128)}', space=vmem, size = 0x9000, scoped, tag = 'internal scratch']
  %s0 = inlined_call_operand.vmem [shape: f32[2,17,64], index: 0, kind: input, shape index: {}]
  %s1 = inlined_call_operand.vmem [shape: f32[1,64], index: 1, kind: input, shape index: {}]
  %s2 = inlined_call_operand.vmem [shape: f32[1,64], index: 2, kind: input, shape index: {}]
  %s3 = inlined_call_operand.vmem [shape: bf16[64,192], index: 3, kind: input, shape index: {}]
  %s4 = inlined_call_operand.vmem [shape: f32[1,192], index: 4, kind: input, shape index: {}]
  %s5 = inlined_call_operand.vmem [shape: bf16[64,64], index: 5, kind: input, shape index: {}]
  %s6 = inlined_call_operand.vmem [shape: f32[1,64], index: 6, kind: input, shape index: {}]
  %s7 = inlined_call_operand.vmem [shape: f32[1,64], index: 7, kind: input, shape index: {}]
  %s8 = inlined_call_operand.vmem [shape: f32[1,64], index: 8, kind: input, shape index: {}]
  %s9 = inlined_call_operand.vmem [shape: bf16[64,256], index: 9, kind: input, shape index: {}]
  %s10 = inlined_call_operand.vmem [shape: f32[1,256], index: 10, kind: input, shape index: {}]
  %s11 = inlined_call_operand.vmem [shape: bf16[256,64], index: 11, kind: input, shape index: {}]
  %s12 = inlined_call_operand.vmem [shape: f32[1,64], index: 12, kind: input, shape index: {}]
  %s13 = inlined_call_operand.vmem [shape: f32[2,17,64], index: 13, kind: output, shape index: {}]
  %s14 = sld [smem:[#allocation0]]
  $region85: #{vit_forward.5} parent=0
    _
  %s16 = ssub.s32 1, %s14
  %s17 = scalar_select 0, %s16, %s14
  loop: start=0, step=1, limit=4
  $region2: #{vit_forward.5} parent=0 // loop_pre_header
    _
  $region3: #{vit_forward.5} parent=0 // loop_header
    %s19 = sphi 0, %s23
    %p20 = scmp.ge.s32.totalorder %s19, 4
    %s29 = sphi 0, %s31
    %s32 = sphi 0, %s29
    %s33 = sphi 0, %s32
    %s49 = sphi 0, %s33
    %s53 = sphi 0, %s53
    %s55 = sphi 0, %s53
    %s56 = sphi 0, %s55
    %s70 = sphi 0, %s56
    %s74 = sphi 0, %s74
    %s76 = sphi 0, %s74
    %s77 = sphi 0, %s76
    %s91 = sphi 0, %s77
    %s95 = sphi 0, %s95
    %s97 = sphi 0, %s95
    %s98 = sphi 0, %s97
    %s112 = sphi 0, %s98
    %s116 = sphi 0, %s116
    %s118 = sphi 0, %s116
    %s119 = sphi 0, %s118
    %s133 = sphi 0, %s119
    %s137 = sphi 0, %s137
    %s139 = sphi 0, %s137
    %s140 = sphi 0, %s139
    %s154 = sphi 0, %s140
    %s158 = sphi 0, %s158
    %s160 = sphi 0, %s158
    %s161 = sphi 0, %s160
    %s175 = sphi 0, %s161
    %s179 = sphi 0, %s179
    %s181 = sphi 0, %s179
    %s182 = sphi 0, %s181
    %s196 = sphi 0, %s182
    %s200 = sphi 0, %s200
    %s202 = sphi 0, %s200
    %s203 = sphi 0, %s202
    %s217 = sphi 0, %s203
    %s221 = sphi 0, %s221
    %s223 = sphi 0, %s221
    %s224 = sphi 0, %s223
    %s238 = sphi 0, %s224
    %s242 = sphi 0, %s242
    %s244 = sphi 0, %s242
    %s245 = sphi 0, %s244
    %s259 = sphi 0, %s245
    %s263 = sphi 0, %s263
    %s265 = sphi 0, %s263
    %s266 = sphi 0, %s265
    %s280 = sphi 0, %s266
    %s284 = sphi 0, %s284
    %s286 = sphi 0, %s284
    %s287 = sphi 0, %s286
    %s301 = sphi 0, %s287
    %s307 = sphi 0, %s309
    %s310 = sphi 0, %s307
    %s311 = sphi 0, %s310
    %s327 = sphi 0, %s311
  $region4: #{vit_forward.5} parent=0 // loop_header_branch
    %22 = sbr.rel (%p20) target = $region8
  $region5: #{vit_forward.5} parent=0 // loop_body
    %s24 = ssub.s32 %s19, 1
    %s25 = ssub.s32 %s19, 2
    %s26 = sadd.s32 %s19, 1
    %s27 = ssub.s32 %s19, %s26
    %p28 = scmp.eq.s32.totalorder %s27, 0
    %s30 = sadd.s32 %s29, 1
    %s31 = scalar_select %p28, %s29, %s30
    %p34 = pneg %p28
    %p35 = scmp.eq.s32.totalorder %s19, 1
    %p36 = por %p34, %p35
    %p37 = scmp.ne.s32.totalorder %s29, %s32
    %p38 = scmp.eq.s32.totalorder %s19, 0
    %p39 = por %p37, %p38
    %p40 = scmp.ne.s32.totalorder %s29, %s32
    %p41 = scmp.eq.s32.totalorder %s24, 1
    %p42 = por %p40, %p41
    %p43 = scmp.ne.s32.totalorder %s32, %s33
    %p44 = scmp.eq.s32.totalorder %s24, 0
    %p45 = por %p43, %p44
    %p46 = scmp.ne.s32.totalorder %s32, %s33
    %p47 = scmp.eq.s32.totalorder %s25, 1
    %p48 = por %p46, %p47
    %p50 = scmp.ne.s32.totalorder %s33, %s49
    %p51 = scmp.eq.s32.totalorder %s25, 0
    %p52 = por %p50, %p51
    %s54 = sadd.s32 %s53, 1
    %p57 = scmp.eq.s32.totalorder %s19, 1
    %p58 = scmp.ne.s32.totalorder %s53, %s55
    %p59 = scmp.eq.s32.totalorder %s19, 0
    %p60 = por %p58, %p59
    %p61 = scmp.ne.s32.totalorder %s53, %s55
    %p62 = scmp.eq.s32.totalorder %s24, 1
    %p63 = por %p61, %p62
    %p64 = scmp.ne.s32.totalorder %s55, %s56
    %p65 = scmp.eq.s32.totalorder %s24, 0
    %p66 = por %p64, %p65
    %p67 = scmp.ne.s32.totalorder %s55, %s56
    %p68 = scmp.eq.s32.totalorder %s25, 1
    %p69 = por %p67, %p68
    %p71 = scmp.ne.s32.totalorder %s56, %s70
    %p72 = scmp.eq.s32.totalorder %s25, 0
    %p73 = por %p71, %p72
    %s75 = sadd.s32 %s74, 1
    %p78 = scmp.eq.s32.totalorder %s19, 1
    %p79 = scmp.ne.s32.totalorder %s74, %s76
    %p80 = scmp.eq.s32.totalorder %s19, 0
    %p81 = por %p79, %p80
    %p82 = scmp.ne.s32.totalorder %s74, %s76
    %p83 = scmp.eq.s32.totalorder %s24, 1
    %p84 = por %p82, %p83
    %p85 = scmp.ne.s32.totalorder %s76, %s77
    %p86 = scmp.eq.s32.totalorder %s24, 0
    %p87 = por %p85, %p86
    %p88 = scmp.ne.s32.totalorder %s76, %s77
    %p89 = scmp.eq.s32.totalorder %s25, 1
    %p90 = por %p88, %p89
    %p92 = scmp.ne.s32.totalorder %s77, %s91
    %p93 = scmp.eq.s32.totalorder %s25, 0
    %p94 = por %p92, %p93
    %s96 = sadd.s32 %s95, 1
    %p99 = scmp.eq.s32.totalorder %s19, 1
    %p100 = scmp.ne.s32.totalorder %s95, %s97
    %p101 = scmp.eq.s32.totalorder %s19, 0
    %p102 = por %p100, %p101
    %p103 = scmp.ne.s32.totalorder %s95, %s97
    %p104 = scmp.eq.s32.totalorder %s24, 1
    %p105 = por %p103, %p104
    %p106 = scmp.ne.s32.totalorder %s97, %s98
    %p107 = scmp.eq.s32.totalorder %s24, 0
    %p108 = por %p106, %p107
    %p109 = scmp.ne.s32.totalorder %s97, %s98
    %p110 = scmp.eq.s32.totalorder %s25, 1
    %p111 = por %p109, %p110
    %p113 = scmp.ne.s32.totalorder %s98, %s112
    %p114 = scmp.eq.s32.totalorder %s25, 0
    %p115 = por %p113, %p114
    %s117 = sadd.s32 %s116, 1
    %p120 = scmp.eq.s32.totalorder %s19, 1
    %p121 = scmp.ne.s32.totalorder %s116, %s118
    %p122 = scmp.eq.s32.totalorder %s19, 0
    %p123 = por %p121, %p122
    %p124 = scmp.ne.s32.totalorder %s116, %s118
    %p125 = scmp.eq.s32.totalorder %s24, 1
    %p126 = por %p124, %p125
    %p127 = scmp.ne.s32.totalorder %s118, %s119
    %p128 = scmp.eq.s32.totalorder %s24, 0
    %p129 = por %p127, %p128
    %p130 = scmp.ne.s32.totalorder %s118, %s119
    %p131 = scmp.eq.s32.totalorder %s25, 1
    %p132 = por %p130, %p131
    %p134 = scmp.ne.s32.totalorder %s119, %s133
    %p135 = scmp.eq.s32.totalorder %s25, 0
    %p136 = por %p134, %p135
    %s138 = sadd.s32 %s137, 1
    %p141 = scmp.eq.s32.totalorder %s19, 1
    %p142 = scmp.ne.s32.totalorder %s137, %s139
    %p143 = scmp.eq.s32.totalorder %s19, 0
    %p144 = por %p142, %p143
    %p145 = scmp.ne.s32.totalorder %s137, %s139
    %p146 = scmp.eq.s32.totalorder %s24, 1
    %p147 = por %p145, %p146
    %p148 = scmp.ne.s32.totalorder %s139, %s140
    %p149 = scmp.eq.s32.totalorder %s24, 0
    %p150 = por %p148, %p149
    %p151 = scmp.ne.s32.totalorder %s139, %s140
    %p152 = scmp.eq.s32.totalorder %s25, 1
    %p153 = por %p151, %p152
    %p155 = scmp.ne.s32.totalorder %s140, %s154
    %p156 = scmp.eq.s32.totalorder %s25, 0
    %p157 = por %p155, %p156
    %s159 = sadd.s32 %s158, 1
    %p162 = scmp.eq.s32.totalorder %s19, 1
    %p163 = scmp.ne.s32.totalorder %s158, %s160
    %p164 = scmp.eq.s32.totalorder %s19, 0
    %p165 = por %p163, %p164
    %p166 = scmp.ne.s32.totalorder %s158, %s160
    %p167 = scmp.eq.s32.totalorder %s24, 1
    %p168 = por %p166, %p167
    %p169 = scmp.ne.s32.totalorder %s160, %s161
    %p170 = scmp.eq.s32.totalorder %s24, 0
    %p171 = por %p169, %p170
    %p172 = scmp.ne.s32.totalorder %s160, %s161
    %p173 = scmp.eq.s32.totalorder %s25, 1
    %p174 = por %p172, %p173
    %p176 = scmp.ne.s32.totalorder %s161, %s175
    %p177 = scmp.eq.s32.totalorder %s25, 0
    %p178 = por %p176, %p177
    %s180 = sadd.s32 %s179, 1
    %p183 = scmp.eq.s32.totalorder %s19, 1
    %p184 = scmp.ne.s32.totalorder %s179, %s181
    %p185 = scmp.eq.s32.totalorder %s19, 0
    %p186 = por %p184, %p185
    %p187 = scmp.ne.s32.totalorder %s179, %s181
    %p188 = scmp.eq.s32.totalorder %s24, 1
    %p189 = por %p187, %p188
    %p190 = scmp.ne.s32.totalorder %s181, %s182
    %p191 = scmp.eq.s32.totalorder %s24, 0
    %p192 = por %p190, %p191
    %p193 = scmp.ne.s32.totalorder %s181, %s182
    %p194 = scmp.eq.s32.totalorder %s25, 1
    %p195 = por %p193, %p194
    %p197 = scmp.ne.s32.totalorder %s182, %s196
    %p198 = scmp.eq.s32.totalorder %s25, 0
    %p199 = por %p197, %p198
    %s201 = sadd.s32 %s200, 1
    %p204 = scmp.eq.s32.totalorder %s19, 1
    %p205 = scmp.ne.s32.totalorder %s200, %s202
    %p206 = scmp.eq.s32.totalorder %s19, 0
    %p207 = por %p205, %p206
    %p208 = scmp.ne.s32.totalorder %s200, %s202
    %p209 = scmp.eq.s32.totalorder %s24, 1
    %p210 = por %p208, %p209
    %p211 = scmp.ne.s32.totalorder %s202, %s203
    %p212 = scmp.eq.s32.totalorder %s24, 0
    %p213 = por %p211, %p212
    %p214 = scmp.ne.s32.totalorder %s202, %s203
    %p215 = scmp.eq.s32.totalorder %s25, 1
    %p216 = por %p214, %p215
    %p218 = scmp.ne.s32.totalorder %s203, %s217
    %p219 = scmp.eq.s32.totalorder %s25, 0
    %p220 = por %p218, %p219
    %s222 = sadd.s32 %s221, 1
    %p225 = scmp.eq.s32.totalorder %s19, 1
    %p226 = scmp.ne.s32.totalorder %s221, %s223
    %p227 = scmp.eq.s32.totalorder %s19, 0
    %p228 = por %p226, %p227
    %p229 = scmp.ne.s32.totalorder %s221, %s223
    %p230 = scmp.eq.s32.totalorder %s24, 1
    %p231 = por %p229, %p230
    %p232 = scmp.ne.s32.totalorder %s223, %s224
    %p233 = scmp.eq.s32.totalorder %s24, 0
    %p234 = por %p232, %p233
    %p235 = scmp.ne.s32.totalorder %s223, %s224
    %p236 = scmp.eq.s32.totalorder %s25, 1
    %p237 = por %p235, %p236
    %p239 = scmp.ne.s32.totalorder %s224, %s238
    %p240 = scmp.eq.s32.totalorder %s25, 0
    %p241 = por %p239, %p240
    %s243 = sadd.s32 %s242, 1
    %p246 = scmp.eq.s32.totalorder %s19, 1
    %p247 = scmp.ne.s32.totalorder %s242, %s244
    %p248 = scmp.eq.s32.totalorder %s19, 0
    %p249 = por %p247, %p248
    %p250 = scmp.ne.s32.totalorder %s242, %s244
    %p251 = scmp.eq.s32.totalorder %s24, 1
    %p252 = por %p250, %p251
    %p253 = scmp.ne.s32.totalorder %s244, %s245
    %p254 = scmp.eq.s32.totalorder %s24, 0
    %p255 = por %p253, %p254
    %p256 = scmp.ne.s32.totalorder %s244, %s245
    %p257 = scmp.eq.s32.totalorder %s25, 1
    %p258 = por %p256, %p257
    %p260 = scmp.ne.s32.totalorder %s245, %s259
    %p261 = scmp.eq.s32.totalorder %s25, 0
    %p262 = por %p260, %p261
    %s264 = sadd.s32 %s263, 1
    %p267 = scmp.eq.s32.totalorder %s19, 1
    %p268 = scmp.ne.s32.totalorder %s263, %s265
    %p269 = scmp.eq.s32.totalorder %s19, 0
    %p270 = por %p268, %p269
    %p271 = scmp.ne.s32.totalorder %s263, %s265
    %p272 = scmp.eq.s32.totalorder %s24, 1
    %p273 = por %p271, %p272
    %p274 = scmp.ne.s32.totalorder %s265, %s266
    %p275 = scmp.eq.s32.totalorder %s24, 0
    %p276 = por %p274, %p275
    %p277 = scmp.ne.s32.totalorder %s265, %s266
    %p278 = scmp.eq.s32.totalorder %s25, 1
    %p279 = por %p277, %p278
    %p281 = scmp.ne.s32.totalorder %s266, %s280
    %p282 = scmp.eq.s32.totalorder %s25, 0
    %p283 = por %p281, %p282
    %s285 = sadd.s32 %s284, 1
    %p288 = scmp.eq.s32.totalorder %s19, 1
    %p289 = scmp.ne.s32.totalorder %s284, %s286
    %p290 = scmp.eq.s32.totalorder %s19, 0
    %p291 = por %p289, %p290
    %p292 = scmp.ne.s32.totalorder %s284, %s286
    %p293 = scmp.eq.s32.totalorder %s24, 1
    %p294 = por %p292, %p293
    %p295 = scmp.ne.s32.totalorder %s286, %s287
    %p296 = scmp.eq.s32.totalorder %s24, 0
    %p297 = por %p295, %p296
    %p298 = scmp.ne.s32.totalorder %s286, %s287
    %p299 = scmp.eq.s32.totalorder %s25, 1
    %p300 = por %p298, %p299
    %p302 = scmp.ne.s32.totalorder %s287, %s301
    %p303 = scmp.eq.s32.totalorder %s25, 0
    %p304 = por %p302, %p303
    %s305 = ssub.s32 %s19, %s26
    %p306 = scmp.eq.s32.totalorder %s305, 0
    %s308 = sadd.s32 %s307, 1
    %s309 = scalar_select %p306, %s307, %s308
    %p312 = pneg %p306
    %p313 = scmp.eq.s32.totalorder %s19, 1
    %p314 = por %p312, %p313
    %p315 = scmp.ne.s32.totalorder %s307, %s310
    %p316 = scmp.eq.s32.totalorder %s19, 0
    %p317 = por %p315, %p316
    %p318 = scmp.ne.s32.totalorder %s307, %s310
    %p319 = scmp.eq.s32.totalorder %s24, 1
    %p320 = por %p318, %p319
    %p321 = scmp.ne.s32.totalorder %s310, %s311
    %p322 = scmp.eq.s32.totalorder %s24, 0
    %p323 = por %p321, %p322
    %p324 = scmp.ne.s32.totalorder %s310, %s311
    %p325 = scmp.eq.s32.totalorder %s25, 1
    %p326 = por %p324, %p325
    %p328 = scmp.ne.s32.totalorder %s311, %s327
    %p329 = scmp.eq.s32.totalorder %s25, 0
    %p330 = por %p328, %p329
    %p331 = scmp.le.s32.totalorder 1, %s19
    %p332 = scmp.lt.s32.totalorder %s19, 3
    %p333 = pnand %p331, %p332
    %p334 = pneg %p333
    // Predicated region
    $region9: #{vit_forward.5} parent=5 // pred_check
      _
    $region10: #{vit_forward.5} parent=5 // pred_check_branch
      %336 = sbr.rel (%p333) target = $region12
    $region11: #{vit_forward.5} parent=5 // pred_region
      %s337 = ssub.s32 %s19, 1
      // Predicated region
      $region13: #{vit_forward.5} parent=11 // pred_check
        %p338 = pneg %p66
      $region14: #{vit_forward.5} parent=11 // pred_check_branch
        %340 = sbr.rel (%p338) target = $region16
      $region15: #{vit_forward.5} parent=11 // pred_region
        _
      $region16: #{vit_forward.5} parent=11 // pred_fallthru
        _
      // Predicated region
      $region17: #{vit_forward.5} parent=11 // pred_check
        %p341 = pneg %p87
      $region18: #{vit_forward.5} parent=11 // pred_check_branch
        %343 = sbr.rel (%p341) target = $region20
      $region19: #{vit_forward.5} parent=11 // pred_region
        _
      $region20: #{vit_forward.5} parent=11 // pred_fallthru
        _
      // Predicated region
      $region21: #{vit_forward.5} parent=11 // pred_check
        %p344 = pneg %p108
      $region22: #{vit_forward.5} parent=11 // pred_check_branch
        %346 = sbr.rel (%p344) target = $region24
      $region23: #{vit_forward.5} parent=11 // pred_region
        _
      $region24: #{vit_forward.5} parent=11 // pred_fallthru
        _
      // Predicated region
      $region25: #{vit_forward.5} parent=11 // pred_check
        %p347 = pneg %p129
      $region26: #{vit_forward.5} parent=11 // pred_check_branch
        %349 = sbr.rel (%p347) target = $region28
      $region27: #{vit_forward.5} parent=11 // pred_region
        _
      $region28: #{vit_forward.5} parent=11 // pred_fallthru
        _
      // Predicated region
      $region29: #{vit_forward.5} parent=11 // pred_check
        %p350 = pneg %p150
      $region30: #{vit_forward.5} parent=11 // pred_check_branch
        %352 = sbr.rel (%p350) target = $region32
      $region31: #{vit_forward.5} parent=11 // pred_region
        _
      $region32: #{vit_forward.5} parent=11 // pred_fallthru
        _
      // Predicated region
      $region33: #{vit_forward.5} parent=11 // pred_check
        %p353 = pneg %p171
      $region34: #{vit_forward.5} parent=11 // pred_check_branch
        %355 = sbr.rel (%p353) target = $region36
      $region35: #{vit_forward.5} parent=11 // pred_region
        _
      $region36: #{vit_forward.5} parent=11 // pred_fallthru
        _
      // Predicated region
      $region37: #{vit_forward.5} parent=11 // pred_check
        %p356 = pneg %p192
      $region38: #{vit_forward.5} parent=11 // pred_check_branch
        %358 = sbr.rel (%p356) target = $region40
      $region39: #{vit_forward.5} parent=11 // pred_region
        _
      $region40: #{vit_forward.5} parent=11 // pred_fallthru
        _
      // Predicated region
      $region41: #{vit_forward.5} parent=11 // pred_check
        %p359 = pneg %p213
      $region42: #{vit_forward.5} parent=11 // pred_check_branch
        %361 = sbr.rel (%p359) target = $region44
      $region43: #{vit_forward.5} parent=11 // pred_region
        _
      $region44: #{vit_forward.5} parent=11 // pred_fallthru
        _
      // Predicated region
      $region45: #{vit_forward.5} parent=11 // pred_check
        %p362 = pneg %p234
      $region46: #{vit_forward.5} parent=11 // pred_check_branch
        %364 = sbr.rel (%p362) target = $region48
      $region47: #{vit_forward.5} parent=11 // pred_region
        _
      $region48: #{vit_forward.5} parent=11 // pred_fallthru
        _
      // Predicated region
      $region49: #{vit_forward.5} parent=11 // pred_check
        %p365 = pneg %p255
      $region50: #{vit_forward.5} parent=11 // pred_check_branch
        %367 = sbr.rel (%p365) target = $region52
      $region51: #{vit_forward.5} parent=11 // pred_region
        _
      $region52: #{vit_forward.5} parent=11 // pred_fallthru
        _
      // Predicated region
      $region53: #{vit_forward.5} parent=11 // pred_check
        %p368 = pneg %p276
      $region54: #{vit_forward.5} parent=11 // pred_check_branch
        %370 = sbr.rel (%p368) target = $region56
      $region55: #{vit_forward.5} parent=11 // pred_region
        _
      $region56: #{vit_forward.5} parent=11 // pred_fallthru
        _
      // Predicated region
      $region57: #{vit_forward.5} parent=11 // pred_check
        %p371 = pneg %p297
      $region58: #{vit_forward.5} parent=11 // pred_check_branch
        %373 = sbr.rel (%p371) target = $region60
      $region59: #{vit_forward.5} parent=11 // pred_region
        _
      $region60: #{vit_forward.5} parent=11 // pred_fallthru
        _
    $region12: #{vit_forward.5} parent=5 // pred_fallthru
      _
    %p374 = scmp.lt.s32.totalorder %s19, 2
    // Predicated region
    $region61: #{vit_forward.5} parent=5 // pred_check
      %p375 = pneg %p374
    $region62: #{vit_forward.5} parent=5 // pred_check_branch
      %377 = sbr.rel (%p375) target = $region64
    $region63: #{vit_forward.5} parent=5 // pred_region
      // Predicated region
      $region65: #{vit_forward.5} parent=63 // pred_check
        %p378 = pneg %p39
      $region66: #{vit_forward.5} parent=63 // pred_check_branch
        %380 = sbr.rel (%p378) target = $region68
      $region67: #{vit_forward.5} parent=63 // pred_region
        %p381 = scmp.lt.s32.totalorder %s19, 1
        %s382 = scalar_select %p381, %s19, 1
        %s383 = smul.addr %s382, 3
        %s384 = smul.addr %s383, 8
        %s385 = scalar_lea.vmem %s0, %s384
      $region68: #{vit_forward.5} parent=63 // pred_fallthru
        _
    $region64: #{vit_forward.5} parent=5 // pred_fallthru
      _
    %p386 = scmp.le.s32.totalorder 1, %s19
    %p387 = scmp.lt.s32.totalorder %s19, 3
    %p388 = pnand %p386, %p387
    %p389 = pneg %p388
    // Predicated region
    $region69: #{vit_forward.5} parent=5 // pred_check
      _
    $region70: #{vit_forward.5} parent=5 // pred_check_branch
      %391 = sbr.rel (%p388) target = $region72
    $region71: #{vit_forward.5} parent=5 // pred_region
      %s392 = ssub.s32 %s19, 1
      %p393 = scmp.lt.s32.totalorder %s24, 1
      %s394 = scalar_select %p393, %s24, 1
      %s395 = smul.addr %s394, 3
      %s396 = smul.addr %s395, 8
      %s397 = scalar_lea.vmem %s0, %s396
      %p398 = pneg %p45
      %p399 = pneg %p42
      %p400 = pneg %p66
      %p401 = pneg %p63
      %p402 = pneg %p87
      %p403 = pneg %p84
      %p404 = pneg %p108
      %p405 = pneg %p105
      %p406 = pneg %p129
      %p407 = pneg %p126
      %p408 = pneg %p150
      %p409 = pneg %p147
      %p410 = pneg %p171
      %p411 = pneg %p168
      %p412 = pneg %p192
      %p413 = pneg %p189
      %p414 = pneg %p213
      %p415 = pneg %p210
      %p416 = pneg %p234
      %p417 = pneg %p231
      %p418 = pneg %p255
      %p419 = pneg %p252
      %p420 = pneg %p276
      %p421 = pneg %p273
      %p422 = pneg %p297
      %p423 = pneg %p294
      %p424 = pneg %p323
      %p425 = pneg %p320
      %p426 = scmp.lt.s32.totalorder %s24, 1
      %s427 = scalar_select %p426, %s24, 1
      %s428 = smul.addr %s427, 3
      %s429 = smul.addr %s428, 8
      %s430 = scalar_lea.vmem %s13, %s429
      %p431 = scmp.lt.s32.totalorder %s24, 1
      %s432 = scalar_select %p431, %s24, 1
      %s433 = smul.addr %s432, 3
      %s434 = smul.addr %s433, 8
      %s435 = scalar_lea.vmem %s0, %s434
      %p436 = scmp.lt.s32.totalorder %s24, 1
      %s437 = scalar_select %p436, %s24, 1
      %s438 = smul.addr %s437, 3
      %s439 = smul.addr %s438, 8
      %s440 = scalar_lea.vmem %s13, %s439
      %v442 = vld [vmem:[%s435] sm:$0xff]
      %v443 = vld [vmem:[%s435 + $0x8] sm:$0xff]
      %v444 = vld [vmem:[%s435 + $0x10] sm:$0x1]
      %v445 = vld [vmem:[%s1] sm:$0x1]
      %v446 = vld [vmem:[%s2] sm:$0x1]
      %vm447 = vcmask 523264
      %v448 = vsel %vm447, %v442, 0.0
      %449 = vadd.xlane.f32.xlu0 %v448
      %v450 = vpop.xlane.xlu0 %449
      %v451 = vsel %vm447, %v443, 0.0
      %452 = vadd.xlane.f32.xlu0 %v451
      %v453 = vpop.xlane.xlu0 %452
      %vm454 = vcmask 516096
      %v455 = vsel %vm454, %v444, 0.0
      %456 = vadd.xlane.f32.xlu0 %v455
      %v457 = vpop.xlane.xlu0 %456
      %v458 = vrcp.pop 64.0
      %v459 = vmul.f32 64.0, %v458
      %v460 = vsub.f32 1.0, %v459
      %v461 = vmul.f32 %v458, %v460
      %v462 = vadd.f32 %v458, %v461
      %vm463 = vweird.f32 %v458
      %v464 = vsel %vm463, %v458, %v462
      %v465 = vmul.f32 %v450, %v464
      %v466 = vmul.f32 %v453, %v464
      %v467 = vmul.f32 %v457, %v464
      %v468 = vsub.f32 %v442, %v465
      %v469 = vsub.f32 %v443, %v466
      %v470 = vsub.f32 %v444, %v467
      %v471 = vmul.f32 %v468, %v468
      %v472 = vmul.f32 %v469, %v469
      %v473 = vmul.f32 %v470, %v470
      %v474 = vsel %vm447, %v471, 0.0
      %475 = vadd.xlane.f32.xlu0 %v474
      %v476 = vpop.xlane.xlu0 %475
      %v477 = vsel %vm447, %v472, 0.0
      %478 = vadd.xlane.f32.xlu0 %v477
      %v479 = vpop.xlane.xlu0 %478
      %v480 = vsel %vm454, %v473, 0.0
      %481 = vadd.xlane.f32.xlu0 %v480
      %v482 = vpop.xlane.xlu0 %481
      %v483 = vmul.f32 %v476, %v464
      %v484 = vmul.f32 %v479, %v464
      %v485 = vmul.f32 %v482, %v464
      %v486 = vadd.f32 %v483, 1e-05
      %v487 = vadd.f32 %v484, 1e-05
      %v488 = vadd.f32 %v485, 1e-05
      %v489 = vrsqrt.pop %v486
      %v490 = vmul.f32 %v489, %v486
      %v491 = vmul.f32 %v490, %v489
      %v492 = vmul.f32 0.5, %v491
      %v493 = vsub.f32 1.5, %v492
      %v494 = vmul.f32 %v489, %v493
      %vm495 = vweird.f32 %v486
      %vm496 = vweird.f32 %v489
      %vm497 = vmor %vm495, %vm496
      %v498 = vsel %vm497, %v489, %v494
      %v499 = vrsqrt.pop %v487
      %v500 = vmul.f32 %v499, %v487
      %v501 = vmul.f32 %v500, %v499
      %v502 = vmul.f32 0.5, %v501
      %v503 = vsub.f32 1.5, %v502
      %v504 = vmul.f32 %v499, %v503
      %vm505 = vweird.f32 %v487
      %vm506 = vweird.f32 %v499
      %vm507 = vmor %vm505, %vm506
      %v508 = vsel %vm507, %v499, %v504
      %v509 = vrsqrt.pop %v488
      %v510 = vmul.f32 %v509, %v488
      %v511 = vmul.f32 %v510, %v509
      %v512 = vmul.f32 0.5, %v511
      %v513 = vsub.f32 1.5, %v512
      %v514 = vmul.f32 %v509, %v513
      %vm515 = vweird.f32 %v488
      %vm516 = vweird.f32 %v509
      %vm517 = vmor %vm515, %vm516
      %v518 = vsel %vm517, %v509, %v514
      %v519 = vmul.f32 %v468, %v498
      %v520 = vmul.f32 %v469, %v508
      %v521 = vmul.f32 %v470, %v518
      %v523 = vperm.slane %v445, 0
      %v525 = vmul.f32 %v519, %v523
      %v526 = vmul.f32 %v520, %v523
      %v527 = vmul.f32 %v521, %v523
      %v529 = vperm.slane %v446, 0
      %v531 = vadd.f32 %v525, %v529
      %v532 = vadd.f32 %v526, %v529
      %v533 = vadd.f32 %v527, %v529
      %v534 = vpack.c.bf16 %v532, %v531
      %v535 = vpack.c.bf16 %v533, %v533
      %v536 = vld [vmem:[%s3] sm:$0xff]
      %v537 = vld [vmem:[%s3 + $0x8] sm:$0xff]
      %v538 = vld [vmem:[%s3 + $0x10] sm:$0xff]
      %v539 = vld [vmem:[%s3 + $0x18] sm:$0xff]
      %v540 = vld [vmem:[%s3 + $0x20] sm:$0xff]
      %v541 = vld [vmem:[%s3 + $0x28] sm:$0xff]
      %v542 = vld [vmem:[%s3 + $0x30] sm:$0xff]
      %v543 = vld [vmem:[%s3 + $0x38] sm:$0xff]
      %v544 = vld [vmem:[%s4] sm:$0x3]
      %v546 = vperm.slane %v544, 0
      %v547 = vperm.slane %v544, 1
      %v558 = vunpack.c.l.b16 %v536
      %v559 = vunpack.c.h.b16 %v536
      %v560 = vunpack.c.l.b16 %v537
      %v561 = vunpack.c.h.b16 %v537
      %v562 = vunpack.c.l.b16 %v538
      %v563 = vunpack.c.h.b16 %v538
      %v564 = vunpack.c.l.b16 %v539
      %v565 = vunpack.c.h.b16 %v539
      %v566 = vunpack.c.l.b16 %v540
      %v567 = vunpack.c.h.b16 %v540
      %v568 = vunpack.c.l.b16 %v541
      %v569 = vunpack.c.h.b16 %v541
      %v570 = vunpack.c.l.b16 %v542
      %v571 = vunpack.c.h.b16 %v542
      %v572 = vunpack.c.l.b16 %v543
      %v573 = vunpack.c.h.b16 %v543
      %v574 = vpack.c.b16 %v560, %v558
      %v575 = vpack.c.b16 %v561, %v559
      %v576 = vpack.c.b16 %v564, %v562
      %v577 = vpack.c.b16 %v565, %v563
      %v578 = vpack.c.b16 %v568, %v566
      %v579 = vpack.c.b16 %v569, %v567
      %v580 = vpack.c.b16 %v572, %v570
      %v581 = vpack.c.b16 %v573, %v571
      %v591 = vsel %vm447, %v534, 0
      %v594 = vsel %vm447, %v535, 0
      %596 = vmatpush.bf16.msra.mxu0 0
      %597 = vmatpush.bf16.msra.mxu0 0
      %598 = vmatpush.bf16.msra.mxu0 0
      %599 = vmatpush.bf16.msra.mxu0 0
      %600 = vmatpush.bf16.msra.mxu0 %v580
      %601 = vmatpush.bf16.msra.mxu0 %v578
      %602 = vmatpush.bf16.msra.mxu0 %v576
      %603 = vmatpush.bf16.msra.mxu0 %v574
      %604 = vmatmul.bf16.gmra.mxu0 %v591
      %v605 = vpop.f32.mrf.mxu0
      %v606 = vadd.f32 %v546, %v605
      %v607 = vpop.f32.mrf.mxu0
      %v608 = vadd.f32 %v546, %v607
      %609 = vmatmul.bf16.gmra.mxu0 %v594
      %v610 = vpop.f32.mrf.mxu0
      %v611 = vadd.f32 %v546, %v610
      %v612 = vpop.f32.mrf.mxu0
      %613 = vdwg.mxu0
      %614 = vmatpush.bf16.msra.mxu0 0
      %615 = vmatpush.bf16.msra.mxu0 0
      %616 = vmatpush.bf16.msra.mxu0 0
      %617 = vmatpush.bf16.msra.mxu0 0
      %618 = vmatpush.bf16.msra.mxu0 %v581
      %619 = vmatpush.bf16.msra.mxu0 %v579
      %620 = vmatpush.bf16.msra.mxu0 %v577
      %621 = vmatpush.bf16.msra.mxu0 %v575
      %622 = vmatmul.bf16.gmra.mxu0 %v591
      %v623 = vpop.f32.mrf.mxu0
      %v624 = vadd.f32 %v547, %v623
      %v625 = vpop.f32.mrf.mxu0
      %v626 = vadd.f32 %v547, %v625
      %627 = vmatmul.bf16.gmra.mxu0 %v594
      %v628 = vpop.f32.mrf.mxu0
      %v629 = vadd.f32 %v547, %v628
      %v630 = vpop.f32.mrf.mxu0
      %631 = vdwg.mxu0
      %v632 = vpack.c.bf16 %v608, %v606
      %v633 = vpack.c.bf16 %v611, %v611
      %v634 = vpack.c.bf16 %v626, %v624
      %v635 = vpack.c.bf16 %v629, %v629
      %638 = vrot.lane.b32.xlu0 %v632, 64
      %v639 = vpop.permute.xlu0 %638
      %640 = vrot.lane.b32.xlu0 %v633, 64
      %v641 = vpop.permute.xlu0 %640
      %v643 = vsel %vm447, %v632, 0
      %v646 = vsel %vm447, %v633, 0
      %v649 = vsel %vm447, %v639, 0
      %v652 = vsel %vm447, %v641, 0
      %654 = vmatpush.bf16.xpose.msra.mxu0 0
      %655 = vmatpush.bf16.xpose.msra.mxu0 0
      %656 = vmatpush.bf16.xpose.msra.mxu0 0
      %657 = vmatpush.bf16.xpose.msra.mxu0 0
      %658 = vmatpush.bf16.xpose.msra.mxu0 0
      %659 = vmatpush.bf16.xpose.msra.mxu0 0
      %660 = vmatpush.bf16.xpose.msra.mxu0 %v652
      %661 = vmatpush.bf16.xpose.msra.mxu0 %v649
      %662 = vmatmul.bf16.gmra.mxu0 %v643
      %v663 = vpop.f32.mrf.mxu0
      %v664 = vadd.f32 0.0, %v663
      %v665 = vpop.f32.mrf.mxu0
      %v666 = vadd.f32 0.0, %v665
      %667 = vmatmul.bf16.gmra.mxu0 %v646
      %v668 = vpop.f32.mrf.mxu0
      %v669 = vadd.f32 0.0, %v668
      %v670 = vpop.f32.mrf.mxu0
      %671 = vdwg.mxu0
      %v672 = vmul.f32 %v664, 0.125
      %v673 = vmul.f32 %v666, 0.125
      %v674 = vmul.f32 %v669, 0.125
      %vm675 = vcmask 138240
      %v676 = vsel %vm675, %v672, -inf
      %677 = vmax.xlane.f32.xlu0 %v676
      %v678 = vpop.xlane.xlu0 %677
      %v679 = vsel %vm675, %v673, -inf
      %680 = vmax.xlane.f32.xlu0 %v679
      %v681 = vpop.xlane.xlu0 %680
      %vm682 = vcmask 131072
      %v683 = vsel %vm682, %v674, -inf
      %684 = vmax.xlane.f32.xlu0 %v683
      %v685 = vpop.xlane.xlu0 %684
      %v686 = vsub.f32 %v672, %v678
      %v687 = vsub.f32 %v673, %v681
      %v688 = vsub.f32 %v674, %v685
      %v689 = vmul.f32 %v686, 1.442695
      %v690 = vpow.pop %v689
      %v691 = vmul.f32 %v687, 1.442695
      %v692 = vpow.pop %v691
      %v693 = vmul.f32 %v688, 1.442695
      %v694 = vpow.pop %v693
      %v695 = vsel %vm675, %v690, 0.0
      %696 = vadd.xlane.f32.xlu0 %v695
      %v697 = vpop.xlane.xlu0 %696
      %v698 = vsel %vm675, %v692, 0.0
      %699 = vadd.xlane.f32.xlu0 %v698
      %v700 = vpop.xlane.xlu0 %699
      %v701 = vsel %vm682, %v694, 0.0
      %702 = vadd.xlane.f32.xlu0 %v701
      %v703 = vpop.xlane.xlu0 %702
      %v704 = vrcp.pop %v697
      %v705 = vmul.f32 %v697, %v704
      %v706 = vsub.f32 1.0, %v705
      %v707 = vmul.f32 %v704, %v706
      %v708 = vadd.f32 %v704, %v707
      %vm709 = vweird.f32 %v697
      %vm710 = vweird.f32 %v704
      %vm711 = vmor %vm709, %vm710
      %v712 = vsel %vm711, %v704, %v708
      %v713 = vand.u32 2147483647, %v697
      %vm714 = vcmp.eq.f32.partialorder %v713, 8.507059e+37
      %v715 = vand.u32 %v697, 2147483648
      %v716 = vor.u32 1.1754944e-38, %v715
      %v717 = vsel %vm714, %v716, %v712
      %v718 = vmul.f32 %v690, %v717
      %v719 = vrcp.pop %v700
      %v720 = vmul.f32 %v700, %v719
      %v721 = vsub.f32 1.0, %v720
      %v722 = vmul.f32 %v719, %v721
      %v723 = vadd.f32 %v719, %v722
      %vm724 = vweird.f32 %v700
      %vm725 = vweird.f32 %v719
      %vm726 = vmor %vm724, %vm725
      %v727 = vsel %vm726, %v719, %v723
      %v728 = vand.u32 2147483647, %v700
      %vm729 = vcmp.eq.f32.partialorder %v728, 8.507059e+37
      %v730 = vand.u32 %v700, 2147483648
      %v731 = vor.u32 1.1754944e-38, %v730
      %v732 = vsel %vm729, %v731, %v727
      %v733 = vmul.f32 %v692, %v732
      %v734 = vrcp.pop %v703
      %v735 = vmul.f32 %v703, %v734
      %v736 = vsub.f32 1.0, %v735
      %v737 = vmul.f32 %v734, %v736
      %v738 = vadd.f32 %v734, %v737
      %vm739 = vweird.f32 %v703
      %vm740 = vweird.f32 %v734
      %vm741 = vmor %vm739, %vm740
      %v742 = vsel %vm741, %v734, %v738
      %v743 = vand.u32 2147483647, %v703
      %vm744 = vcmp.eq.f32.partialorder %v743, 8.507059e+37
      %v745 = vand.u32 %v703, 2147483648
      %v746 = vor.u32 1.1754944e-38, %v745
      %v747 = vsel %vm744, %v746, %v742
      %v748 = vmul.f32 %v694, %v747
      %v749 = vpack.c.bf16 %v733, %v718
      %v750 = vpack.c.bf16 %v748, %v748
      %v752 = vsel %vm675, %v749, 0
      %v755 = vsel %vm675, %v750, 0
      %vm757 = vcmask 1040384
      %v758 = vsel 0, 4294967295, 65535
      %v759 = vsel %vm757, %v758, 0
      %v761 = vand.u32 %v635, %v759
      %763 = vmatpush.bf16.msra.mxu0 0
      %764 = vmatpush.bf16.msra.mxu0 0
      %765 = vmatpush.bf16.msra.mxu0 0
      %766 = vmatpush.bf16.msra.mxu0 0
      %767 = vmatpush.bf16.msra.mxu0 0
      %768 = vmatpush.bf16.msra.mxu0 0
      %769 = vmatpush.bf16.msra.mxu0 %v761
      %770 = vmatpush.bf16.msra.mxu0 %v634
      %771 = vmatmul.bf16.gmra.mxu0 %v752
      %v772 = vpop.f32.mrf.mxu0
      %v773 = vadd.f32 0.0, %v772
      %v774 = vpop.f32.mrf.mxu0
      %v775 = vadd.f32 0.0, %v774
      %776 = vmatmul.bf16.gmra.mxu0 %v755
      %v777 = vpop.f32.mrf.mxu0
      %v778 = vadd.f32 0.0, %v777
      %v779 = vpop.f32.mrf.mxu0
      %780 = vdwg.mxu0
      %v781 = vpack.c.bf16 %v775, %v773
      %v782 = vpack.c.bf16 %v778, %v778
      %v783 = vld [vmem:[%s5] sm:$0xf]
      %v784 = vld [vmem:[%s5 + $0x4] sm:$0xf]
      %v785 = vld [vmem:[%s5 + $0x8] sm:$0xf]
      %v786 = vld [vmem:[%s5 + $0xc] sm:$0xf]
      %v787 = vld [vmem:[%s5 + $0x10] sm:$0xf]
      %v788 = vld [vmem:[%s5 + $0x14] sm:$0xf]
      %v789 = vld [vmem:[%s5 + $0x18] sm:$0xf]
      %v790 = vld [vmem:[%s5 + $0x1c] sm:$0xf]
      %v791 = vld [vmem:[%s6] sm:$0x1]
      %v793 = vperm.slane %v791, 0
      %v803 = vunpack.c.l.b16 %v783
      %v804 = vunpack.c.l.b16 %v784
      %v805 = vunpack.c.l.b16 %v785
      %v806 = vunpack.c.l.b16 %v786
      %v807 = vunpack.c.l.b16 %v787
      %v808 = vunpack.c.l.b16 %v788
      %v809 = vunpack.c.l.b16 %v789
      %v810 = vunpack.c.l.b16 %v790
      %v811 = vpack.c.b16 %v804, %v803
      %v812 = vpack.c.b16 %v806, %v805
      %v813 = vpack.c.b16 %v808, %v807
      %v814 = vpack.c.b16 %v810, %v809
      %v820 = vsel %vm447, %v781, 0
      %v823 = vsel %vm447, %v782, 0
      %825 = vmatpush.bf16.msra.mxu0 0
      %826 = vmatpush.bf16.msra.mxu0 0
      %827 = vmatpush.bf16.msra.mxu0 0
      %828 = vmatpush.bf16.msra.mxu0 0
      %829 = vmatpush.bf16.msra.mxu0 %v814
      %830 = vmatpush.bf16.msra.mxu0 %v813
      %831 = vmatpush.bf16.msra.mxu0 %v812
      %832 = vmatpush.bf16.msra.mxu0 %v811
      %833 = vmatmul.bf16.gmra.mxu0 %v820
      %v834 = vpop.f32.mrf.mxu0
      %v835 = vadd.f32 %v793, %v834
      %v836 = vpop.f32.mrf.mxu0
      %v837 = vadd.f32 %v793, %v836
      %838 = vmatmul.bf16.gmra.mxu0 %v823
      %v839 = vpop.f32.mrf.mxu0
      %v840 = vadd.f32 %v793, %v839
      %v841 = vpop.f32.mrf.mxu0
      %842 = vdwg.mxu0
      %v843 = vadd.f32 %v442, %v835
      %v844 = vadd.f32 %v443, %v837
      %v845 = vadd.f32 %v444, %v840
      %v846 = vld [vmem:[%s7] sm:$0x1]
      %v847 = vld [vmem:[%s8] sm:$0x1]
      %v848 = vsel %vm447, %v843, 0.0
      %849 = vadd.xlane.f32.xlu0 %v848
      %v850 = vpop.xlane.xlu0 %849
      %v851 = vsel %vm447, %v844, 0.0
      %852 = vadd.xlane.f32.xlu0 %v851
      %v853 = vpop.xlane.xlu0 %852
      %v854 = vsel %vm454, %v845, 0.0
      %855 = vadd.xlane.f32.xlu0 %v854
      %v856 = vpop.xlane.xlu0 %855
      %v857 = vmul.f32 %v850, %v464
      %v858 = vmul.f32 %v853, %v464
      %v859 = vmul.f32 %v856, %v464
      %v860 = vsub.f32 %v843, %v857
      %v861 = vsub.f32 %v844, %v858
      %v862 = vsub.f32 %v845, %v859
      %v863 = vmul.f32 %v860, %v860
      %v864 = vmul.f32 %v861, %v861
      %v865 = vmul.f32 %v862, %v862
      %v866 = vsel %vm447, %v863, 0.0
      %867 = vadd.xlane.f32.xlu0 %v866
      %v868 = vpop.xlane.xlu0 %867
      %v869 = vsel %vm447, %v864, 0.0
      %870 = vadd.xlane.f32.xlu0 %v869
      %v871 = vpop.xlane.xlu0 %870
      %v872 = vsel %vm454, %v865, 0.0
      %873 = vadd.xlane.f32.xlu0 %v872
      %v874 = vpop.xlane.xlu0 %873
      %v875 = vmul.f32 %v868, %v464
      %v876 = vmul.f32 %v871, %v464
      %v877 = vmul.f32 %v874, %v464
      %v878 = vadd.f32 %v875, 1e-05
      %v879 = vadd.f32 %v876, 1e-05
      %v880 = vadd.f32 %v877, 1e-05
      %v881 = vrsqrt.pop %v878
      %v882 = vmul.f32 %v881, %v878
      %v883 = vmul.f32 %v882, %v881
      %v884 = vmul.f32 0.5, %v883
      %v885 = vsub.f32 1.5, %v884
      %v886 = vmul.f32 %v881, %v885
      %vm887 = vweird.f32 %v878
      %vm888 = vweird.f32 %v881
      %vm889 = vmor %vm887, %vm888
      %v890 = vsel %vm889, %v881, %v886
      %v891 = vrsqrt.pop %v879
      %v892 = vmul.f32 %v891, %v879
      %v893 = vmul.f32 %v892, %v891
      %v894 = vmul.f32 0.5, %v893
      %v895 = vsub.f32 1.5, %v894
      %v896 = vmul.f32 %v891, %v895
      %vm897 = vweird.f32 %v879
      %vm898 = vweird.f32 %v891
      %vm899 = vmor %vm897, %vm898
      %v900 = vsel %vm899, %v891, %v896
      %v901 = vrsqrt.pop %v880
      %v902 = vmul.f32 %v901, %v880
      %v903 = vmul.f32 %v902, %v901
      %v904 = vmul.f32 0.5, %v903
      %v905 = vsub.f32 1.5, %v904
      %v906 = vmul.f32 %v901, %v905
      %vm907 = vweird.f32 %v880
      %vm908 = vweird.f32 %v901
      %vm909 = vmor %vm907, %vm908
      %v910 = vsel %vm909, %v901, %v906
      %v911 = vmul.f32 %v860, %v890
      %v912 = vmul.f32 %v861, %v900
      %v913 = vmul.f32 %v862, %v910
      %v915 = vperm.slane %v846, 0
      %v917 = vmul.f32 %v911, %v915
      %v918 = vmul.f32 %v912, %v915
      %v919 = vmul.f32 %v913, %v915
      %v921 = vperm.slane %v847, 0
      %v923 = vadd.f32 %v917, %v921
      %v924 = vadd.f32 %v918, %v921
      %v925 = vadd.f32 %v919, %v921
      %v926 = vpack.c.bf16 %v924, %v923
      %v927 = vpack.c.bf16 %v925, %v925
      %v928 = vld [vmem:[%s9] sm:$0xff]
      %v929 = vld [vmem:[%s9 + $0x8] sm:$0xff]
      %v930 = vld [vmem:[%s9 + $0x10] sm:$0xff]
      %v931 = vld [vmem:[%s9 + $0x18] sm:$0xff]
      %v932 = vld [vmem:[%s9 + $0x20] sm:$0xff]
      %v933 = vld [vmem:[%s9 + $0x28] sm:$0xff]
      %v934 = vld [vmem:[%s9 + $0x30] sm:$0xff]
      %v935 = vld [vmem:[%s9 + $0x38] sm:$0xff]
      %v936 = vld [vmem:[%s10] sm:$0x3]
      %v938 = vperm.slane %v936, 0
      %v939 = vperm.slane %v936, 1
      %v950 = vunpack.c.l.b16 %v928
      %v951 = vunpack.c.h.b16 %v928
      %v952 = vunpack.c.l.b16 %v929
      %v953 = vunpack.c.h.b16 %v929
      %v954 = vunpack.c.l.b16 %v930
      %v955 = vunpack.c.h.b16 %v930
      %v956 = vunpack.c.l.b16 %v931
      %v957 = vunpack.c.h.b16 %v931
      %v958 = vunpack.c.l.b16 %v932
      %v959 = vunpack.c.h.b16 %v932
      %v960 = vunpack.c.l.b16 %v933
      %v961 = vunpack.c.h.b16 %v933
      %v962 = vunpack.c.l.b16 %v934
      %v963 = vunpack.c.h.b16 %v934
      %v964 = vunpack.c.l.b16 %v935
      %v965 = vunpack.c.h.b16 %v935
      %v966 = vpack.c.b16 %v952, %v950
      %v967 = vpack.c.b16 %v953, %v951
      %v968 = vpack.c.b16 %v956, %v954
      %v969 = vpack.c.b16 %v957, %v955
      %v970 = vpack.c.b16 %v960, %v958
      %v971 = vpack.c.b16 %v961, %v959
      %v972 = vpack.c.b16 %v964, %v962
      %v973 = vpack.c.b16 %v965, %v963
      %v983 = vsel %vm447, %v926, 0
      %v986 = vsel %vm447, %v927, 0
      %988 = vmatpush.bf16.msra.mxu0 0
      %989 = vmatpush.bf16.msra.mxu0 0
      %990 = vmatpush.bf16.msra.mxu0 0
      %991 = vmatpush.bf16.msra.mxu0 0
      %992 = vmatpush.bf16.msra.mxu0 %v972
      %993 = vmatpush.bf16.msra.mxu0 %v970
      %994 = vmatpush.bf16.msra.mxu0 %v968
      %995 = vmatpush.bf16.msra.mxu0 %v966
      %996 = vmatmul.bf16.gmra.mxu0 %v983
      %v997 = vpop.f32.mrf.mxu0
      %v998 = vadd.f32 %v938, %v997
      %v999 = vpop.f32.mrf.mxu0
      %v1000 = vadd.f32 %v938, %v999
      %1001 = vmatmul.bf16.gmra.mxu0 %v986
      %v1002 = vpop.f32.mrf.mxu0
      %v1003 = vadd.f32 %v938, %v1002
      %v1004 = vpop.f32.mrf.mxu0
      %1005 = vdwg.mxu0
      %1006 = vmatpush.bf16.msra.mxu0 0
      %1007 = vmatpush.bf16.msra.mxu0 0
      %1008 = vmatpush.bf16.msra.mxu0 0
      %1009 = vmatpush.bf16.msra.mxu0 0
      %1010 = vmatpush.bf16.msra.mxu0 %v973
      %1011 = vmatpush.bf16.msra.mxu0 %v971
      %1012 = vmatpush.bf16.msra.mxu0 %v969
      %1013 = vmatpush.bf16.msra.mxu0 %v967
      %1014 = vmatmul.bf16.gmra.mxu0 %v983
      %v1015 = vpop.f32.mrf.mxu0
      %v1016 = vadd.f32 %v939, %v1015
      %v1017 = vpop.f32.mrf.mxu0
      %v1018 = vadd.f32 %v939, %v1017
      %1019 = vmatmul.bf16.gmra.mxu0 %v986
      %v1020 = vpop.f32.mrf.mxu0
      %v1021 = vadd.f32 %v939, %v1020
      %v1022 = vpop.f32.mrf.mxu0
      %1023 = vdwg.mxu0
      %v1024 = vmul.f32 %v998, 1.702
      %v1025 = vmul.f32 %v1016, 1.702
      %v1026 = vmul.f32 %v1000, 1.702
      %v1027 = vmul.f32 %v1018, 1.702
      %v1028 = vmul.f32 %v1003, 1.702
      %v1029 = vmul.f32 %v1021, 1.702
      %v1030 = vxor.u32 %v1024, 2147483648
      %v1031 = vxor.u32 %v1025, 2147483648
      %v1032 = vxor.u32 %v1026, 2147483648
      %v1033 = vxor.u32 %v1027, 2147483648
      %v1034 = vxor.u32 %v1028, 2147483648
      %v1035 = vxor.u32 %v1029, 2147483648
      %v1036 = vmul.f32 %v1030, 1.442695
      %v1037 = vpow.pop %v1036
      %v1038 = vmul.f32 %v1031, 1.442695
      %v1039 = vpow.pop %v1038
      %v1040 = vmul.f32 %v1032, 1.442695
      %v1041 = vpow.pop %v1040
      %v1042 = vmul.f32 %v1033, 1.442695
      %v1043 = vpow.pop %v1042
      %v1044 = vmul.f32 %v1034, 1.442695
      %v1045 = vpow.pop %v1044
      %v1046 = vmul.f32 %v1035, 1.442695
      %v1047 = vpow.pop %v1046
      %v1048 = vadd.f32 %v1037, 1.0
      %v1049 = vadd.f32 %v1039, 1.0
      %v1050 = vadd.f32 %v1041, 1.0
      %v1051 = vadd.f32 %v1043, 1.0
      %v1052 = vadd.f32 %v1045, 1.0
      %v1053 = vadd.f32 %v1047, 1.0
      %v1054 = vrcp.pop %v1048
      %v1055 = vmul.f32 %v1048, %v1054
      %v1056 = vsub.f32 1.0, %v1055
      %v1057 = vmul.f32 %v1054, %v1056
      %v1058 = vadd.f32 %v1054, %v1057
      %vm1059 = vweird.f32 %v1048
      %vm1060 = vweird.f32 %v1054
      %vm1061 = vmor %vm1059, %vm1060
      %v1062 = vsel %vm1061, %v1054, %v1058
      %v1063 = vand.u32 2147483647, %v1048
      %vm1064 = vcmp.eq.f32.partialorder %v1063, 8.507059e+37
      %v1065 = vand.u32 %v1048, 2147483648
      %v1066 = vor.u32 1.1754944e-38, %v1065
      %v1067 = vsel %vm1064, %v1066, %v1062
      %v1068 = vmul.f32 1.0, %v1067
      %v1069 = vrcp.pop %v1049
      %v1070 = vmul.f32 %v1049, %v1069
      %v1071 = vsub.f32 1.0, %v1070
      %v1072 = vmul.f32 %v1069, %v1071
      %v1073 = vadd.f32 %v1069, %v1072
      %vm1074 = vweird.f32 %v1049
      %vm1075 = vweird.f32 %v1069
      %vm1076 = vmor %vm1074, %vm1075
      %v1077 = vsel %vm1076, %v1069, %v1073
      %v1078 = vand.u32 2147483647, %v1049
      %vm1079 = vcmp.eq.f32.partialorder %v1078, 8.507059e+37
      %v1080 = vand.u32 %v1049, 2147483648
      %v1081 = vor.u32 1.1754944e-38, %v1080
      %v1082 = vsel %vm1079, %v1081, %v1077
      %v1083 = vmul.f32 1.0, %v1082
      %v1084 = vrcp.pop %v1050
      %v1085 = vmul.f32 %v1050, %v1084
      %v1086 = vsub.f32 1.0, %v1085
      %v1087 = vmul.f32 %v1084, %v1086
      %v1088 = vadd.f32 %v1084, %v1087
      %vm1089 = vweird.f32 %v1050
      %vm1090 = vweird.f32 %v1084
      %vm1091 = vmor %vm1089, %vm1090
      %v1092 = vsel %vm1091, %v1084, %v1088
      %v1093 = vand.u32 2147483647, %v1050
      %vm1094 = vcmp.eq.f32.partialorder %v1093, 8.507059e+37
      %v1095 = vand.u32 %v1050, 2147483648
      %v1096 = vor.u32 1.1754944e-38, %v1095
      %v1097 = vsel %vm1094, %v1096, %v1092
      %v1098 = vmul.f32 1.0, %v1097
      %v1099 = vrcp.pop %v1051
      %v1100 = vmul.f32 %v1051, %v1099
      %v1101 = vsub.f32 1.0, %v1100
      %v1102 = vmul.f32 %v1099, %v1101
      %v1103 = vadd.f32 %v1099, %v1102
      %vm1104 = vweird.f32 %v1051
      %vm1105 = vweird.f32 %v1099
      %vm1106 = vmor %vm1104, %vm1105
      %v1107 = vsel %vm1106, %v1099, %v1103
      %v1108 = vand.u32 2147483647, %v1051
      %vm1109 = vcmp.eq.f32.partialorder %v1108, 8.507059e+37
      %v1110 = vand.u32 %v1051, 2147483648
      %v1111 = vor.u32 1.1754944e-38, %v1110
      %v1112 = vsel %vm1109, %v1111, %v1107
      %v1113 = vmul.f32 1.0, %v1112
      %v1114 = vrcp.pop %v1052
      %v1115 = vmul.f32 %v1052, %v1114
      %v1116 = vsub.f32 1.0, %v1115
      %v1117 = vmul.f32 %v1114, %v1116
      %v1118 = vadd.f32 %v1114, %v1117
      %vm1119 = vweird.f32 %v1052
      %vm1120 = vweird.f32 %v1114
      %vm1121 = vmor %vm1119, %vm1120
      %v1122 = vsel %vm1121, %v1114, %v1118
      %v1123 = vand.u32 2147483647, %v1052
      %vm1124 = vcmp.eq.f32.partialorder %v1123, 8.507059e+37
      %v1125 = vand.u32 %v1052, 2147483648
      %v1126 = vor.u32 1.1754944e-38, %v1125
      %v1127 = vsel %vm1124, %v1126, %v1122
      %v1128 = vmul.f32 1.0, %v1127
      %v1129 = vrcp.pop %v1053
      %v1130 = vmul.f32 %v1053, %v1129
      %v1131 = vsub.f32 1.0, %v1130
      %v1132 = vmul.f32 %v1129, %v1131
      %v1133 = vadd.f32 %v1129, %v1132
      %vm1134 = vweird.f32 %v1053
      %vm1135 = vweird.f32 %v1129
      %vm1136 = vmor %vm1134, %vm1135
      %v1137 = vsel %vm1136, %v1129, %v1133
      %v1138 = vand.u32 2147483647, %v1053
      %vm1139 = vcmp.eq.f32.partialorder %v1138, 8.507059e+37
      %v1140 = vand.u32 %v1053, 2147483648
      %v1141 = vor.u32 1.1754944e-38, %v1140
      %v1142 = vsel %vm1139, %v1141, %v1137
      %v1143 = vmul.f32 1.0, %v1142
      %v1144 = vmul.f32 %v998, %v1068
      %v1145 = vmul.f32 %v1016, %v1083
      %v1146 = vmul.f32 %v1000, %v1098
      %v1147 = vmul.f32 %v1018, %v1113
      %v1148 = vmul.f32 %v1003, %v1128
      %v1149 = vmul.f32 %v1021, %v1143
      %v1150 = vpack.c.bf16 %v1146, %v1144
      %v1151 = vpack.c.bf16 %v1147, %v1145
      %v1152 = vpack.c.bf16 %v1148, %v1148
      %v1153 = vpack.c.bf16 %v1149, %v1149
      %v1154 = vld [vmem:[%s11] sm:$0xf]
      %v1155 = vld [vmem:[%s11 + $0x4] sm:$0xf]
      %v1156 = vld [vmem:[%s11 + $0x8] sm:$0xf]
      %v1157 = vld [vmem:[%s11 + $0xc] sm:$0xf]
      %v1158 = vld [vmem:[%s11 + $0x10] sm:$0xf]
      %v1159 = vld [vmem:[%s11 + $0x14] sm:$0xf]
      %v1160 = vld [vmem:[%s11 + $0x18] sm:$0xf]
      %v1161 = vld [vmem:[%s11 + $0x1c] sm:$0xf]
      %v1162 = vld [vmem:[%s11 + $0x20] sm:$0xf]
      %v1163 = vld [vmem:[%s11 + $0x24] sm:$0xf]
      %v1164 = vld [vmem:[%s11 + $0x28] sm:$0xf]
      %v1165 = vld [vmem:[%s11 + $0x2c] sm:$0xf]
      %v1166 = vld [vmem:[%s11 + $0x30] sm:$0xf]
      %v1167 = vld [vmem:[%s11 + $0x34] sm:$0xf]
      %v1168 = vld [vmem:[%s11 + $0x38] sm:$0xf]
      %v1169 = vld [vmem:[%s11 + $0x3c] sm:$0xf]
      %v1170 = vld [vmem:[%s11 + $0x40] sm:$0xf]
      %v1171 = vld [vmem:[%s11 + $0x44] sm:$0xf]
      %v1172 = vld [vmem:[%s11 + $0x48] sm:$0xf]
      %v1173 = vld [vmem:[%s11 + $0x4c] sm:$0xf]
      %v1174 = vld [vmem:[%s11 + $0x50] sm:$0xf]
      %v1175 = vld [vmem:[%s11 + $0x54] sm:$0xf]
      %v1176 = vld [vmem:[%s11 + $0x58] sm:$0xf]
      %v1177 = vld [vmem:[%s11 + $0x5c] sm:$0xf]
      %v1178 = vld [vmem:[%s11 + $0x60] sm:$0xf]
      %v1179 = vld [vmem:[%s11 + $0x64] sm:$0xf]
      %v1180 = vld [vmem:[%s11 + $0x68] sm:$0xf]
      %v1181 = vld [vmem:[%s11 + $0x6c] sm:$0xf]
      %v1182 = vld [vmem:[%s11 + $0x70] sm:$0xf]
      %v1183 = vld [vmem:[%s11 + $0x74] sm:$0xf]
      %v1184 = vld [vmem:[%s11 + $0x78] sm:$0xf]
      %v1185 = vld [vmem:[%s11 + $0x7c] sm:$0xf]
      %v1186 = vld [vmem:[%s12] sm:$0x1]
      %v1188 = vperm.slane %v1186, 0
      %v1222 = vunpack.c.l.b16 %v1154
      %v1223 = vunpack.c.l.b16 %v1155
      %v1224 = vunpack.c.l.b16 %v1156
      %v1225 = vunpack.c.l.b16 %v1157
      %v1226 = vunpack.c.l.b16 %v1158
      %v1227 = vunpack.c.l.b16 %v1159
      %v1228 = vunpack.c.l.b16 %v1160
      %v1229 = vunpack.c.l.b16 %v1161
      %v1230 = vunpack.c.l.b16 %v1162
      %v1231 = vunpack.c.l.b16 %v1163
      %v1232 = vunpack.c.l.b16 %v1164
      %v1233 = vunpack.c.l.b16 %v1165
      %v1234 = vunpack.c.l.b16 %v1166
      %v1235 = vunpack.c.l.b16 %v1167
      %v1236 = vunpack.c.l.b16 %v1168
      %v1237 = vunpack.c.l.b16 %v1169
      %v1238 = vunpack.c.l.b16 %v1170
      %v1239 = vunpack.c.l.b16 %v1171
      %v1240 = vunpack.c.l.b16 %v1172
      %v1241 = vunpack.c.l.b16 %v1173
      %v1242 = vunpack.c.l.b16 %v1174
      %v1243 = vunpack.c.l.b16 %v1175
      %v1244 = vunpack.c.l.b16 %v1176
      %v1245 = vunpack.c.l.b16 %v1177
      %v1246 = vunpack.c.l.b16 %v1178
      %v1247 = vunpack.c.l.b16 %v1179
      %v1248 = vunpack.c.l.b16 %v1180
      %v1249 = vunpack.c.l.b16 %v1181
      %v1250 = vunpack.c.l.b16 %v1182
      %v1251 = vunpack.c.l.b16 %v1183
      %v1252 = vunpack.c.l.b16 %v1184
      %v1253 = vunpack.c.l.b16 %v1185
      %v1254 = vpack.c.b16 %v1223, %v1222
      %v1255 = vpack.c.b16 %v1225, %v1224
      %v1256 = vpack.c.b16 %v1227, %v1226
      %v1257 = vpack.c.b16 %v1229, %v1228
      %v1258 = vpack.c.b16 %v1231, %v1230
      %v1259 = vpack.c.b16 %v1233, %v1232
      %v1260 = vpack.c.b16 %v1235, %v1234
      %v1261 = vpack.c.b16 %v1237, %v1236
      %v1262 = vpack.c.b16 %v1239, %v1238
      %v1263 = vpack.c.b16 %v1241, %v1240
      %v1264 = vpack.c.b16 %v1243, %v1242
      %v1265 = vpack.c.b16 %v1245, %v1244
      %v1266 = vpack.c.b16 %v1247, %v1246
      %v1267 = vpack.c.b16 %v1249, %v1248
      %v1268 = vpack.c.b16 %v1251, %v1250
      %v1269 = vpack.c.b16 %v1253, %v1252
      %1286 = vmatpush.bf16.msra.mxu0 %v1261
      %1287 = vmatpush.bf16.msra.mxu0 %v1260
      %1288 = vmatpush.bf16.msra.mxu0 %v1259
      %1289 = vmatpush.bf16.msra.mxu0 %v1258
      %1290 = vmatpush.bf16.msra.mxu0 %v1257
      %1291 = vmatpush.bf16.msra.mxu0 %v1256
      %1292 = vmatpush.bf16.msra.mxu0 %v1255
      %1293 = vmatpush.bf16.msra.mxu0 %v1254
      %1294 = vmatmul.bf16.gmra.mxu0 %v1150
      %v1295 = vpop.f32.mrf.mxu0
      %v1296 = vadd.f32 %v1188, %v1295
      %v1297 = vpop.f32.mrf.mxu0
      %v1298 = vadd.f32 %v1188, %v1297
      %1299 = vmatmul.bf16.gmra.mxu0 %v1152
      %v1300 = vpop.f32.mrf.mxu0
      %v1301 = vadd.f32 %v1188, %v1300
      %v1302 = vpop.f32.mrf.mxu0
      %1303 = vdwg.mxu0
      %1304 = vmatpush.bf16.msra.mxu0 %v1269
      %1305 = vmatpush.bf16.msra.mxu0 %v1268
      %1306 = vmatpush.bf16.msra.mxu0 %v1267
      %1307 = vmatpush.bf16.msra.mxu0 %v1266
      %1308 = vmatpush.bf16.msra.mxu0 %v1265
      %1309 = vmatpush.bf16.msra.mxu0 %v1264
      %1310 = vmatpush.bf16.msra.mxu0 %v1263
      %1311 = vmatpush.bf16.msra.mxu0 %v1262
      %1312 = vmatmul.bf16.gmra.mxu0 %v1151
      %v1313 = vpop.f32.mrf.mxu0
      %v1314 = vadd.f32 %v1296, %v1313
      %v1315 = vpop.f32.mrf.mxu0
      %v1316 = vadd.f32 %v1298, %v1315
      %1317 = vmatmul.bf16.gmra.mxu0 %v1153
      %v1318 = vpop.f32.mrf.mxu0
      %v1319 = vadd.f32 %v1301, %v1318
      %v1320 = vpop.f32.mrf.mxu0
      %1321 = vdwg.mxu0
      %v1322 = vadd.f32 %v843, %v1314
      %v1323 = vadd.f32 %v844, %v1316
      %v1324 = vadd.f32 %v845, %v1319
      %1325 = vst.msk [vmem:[%s440] sm:$0xff] %vm447, %v1322
      %1326 = vst.msk [vmem:[%s440 + $0x8] sm:$0xff] %vm447, %v1323
      %1327 = vst.msk [vmem:[%s440 + $0x10] sm:$0x1] %vm454, %v1324
      %p1328 = scmp.lt.s32.totalorder %s24, 1
      %s1329 = scalar_select %p1328, %s24, 1
      %s1330 = smul.addr %s1329, 3
      %s1331 = smul.addr %s1330, 8
      %s1332 = scalar_lea.vmem %s13, %s1331
      // Predicated region
      $region73: #{vit_forward.5} parent=71 // pred_check
        %p1333 = pneg %p320
      $region74: #{vit_forward.5} parent=71 // pred_check_branch
        %1335 = sbr.rel (%p1333) target = $region76
      $region75: #{vit_forward.5} parent=71 // pred_region
        _
      $region76: #{vit_forward.5} parent=71 // pred_fallthru
        _
    $region72: #{vit_forward.5} parent=5 // pred_fallthru
      _
    %p1336 = scmp.le.s32.totalorder 2, %s19
    // Predicated region
    $region77: #{vit_forward.5} parent=5 // pred_check
      %p1337 = pneg %p1336
    $region78: #{vit_forward.5} parent=5 // pred_check_branch
      %1339 = sbr.rel (%p1337) target = $region80
    $region79: #{vit_forward.5} parent=5 // pred_region
      %s1340 = ssub.s32 %s19, 2
      // Predicated region
      $region81: #{vit_forward.5} parent=79 // pred_check
        %p1341 = pneg %p326
      $region82: #{vit_forward.5} parent=79 // pred_check_branch
        %1343 = sbr.rel (%p1341) target = $region84
      $region83: #{vit_forward.5} parent=79 // pred_region
        %p1344 = scmp.lt.s32.totalorder %s25, 1
        %s1345 = scalar_select %p1344, %s25, 1
        %s1346 = smul.addr %s1345, 3
        %s1347 = smul.addr %s1346, 8
        %s1348 = scalar_lea.vmem %s13, %s1347
      $region84: #{vit_forward.5} parent=79 // pred_fallthru
        _
    $region80: #{vit_forward.5} parent=5 // pred_fallthru
      _
  $region6: #{vit_forward.5} parent=0 // loop_footer
    %s23 = sadd.s32 1, %s19
  $region7: #{vit_forward.5} parent=0 // loop_footer_branch
    %18 = sbr.rel target = $region3
  $region8: #{vit_forward.5} parent=0 // loop_exit
    _

</llo_original>
